<compile_context>
chip_gen: v7x
topology: tpu7x:2x2x1
jax: 0.10.0
libtpu: 0.0.40
codegen_flags: <defaults>
</compile_context>

<pallas_src>
import numpy as np
import jax
import jax.numpy as jnp
from jax.experimental import pallas as pl
from jax.experimental.pallas import tpu as pltpu

F32 = jnp.float32
EPS = 1e-5

# Sub-pixel decomposition of ConvTranspose2d(8,1,3,stride=2,padding=1,output_padding=1):
# output pixel (2a+p, 2b+q) accumulates w4[:, ki, kj] * z3[:, a+da, b+db] for these taps.
_PHASE_TAPS = {
    (0, 0): (((1, 1), (0, 0)),),
    (0, 1): (((1, 2), (0, 0)), ((1, 0), (0, 1))),
    (1, 0): (((2, 1), (0, 0)), ((0, 1), (1, 0))),
    (1, 1): (((2, 2), (0, 0)), ((2, 0), (0, 1)), ((0, 2), (1, 0)), ((0, 0), (1, 1))),
}


# ----------------------------- fused Pallas kernel -----------------------------

def _build_kernel(n, hh, wh):
    L = n * hh * wh
    inv_cnt = 1.0 / float(L)

    def kernel(xpatch_ref,                 # [4,16,L] VMEM  pool-phase x tap(9+pad) x pixels
               masks_ref,                  # [9, L]   VMEM  0/1 border-validity per tap
               w1_ref, cb1_ref, g1_ref, b1_ref,      # [8,16],[8,1],[8,1],[8,1]
               w2_ref,                                # [8,9]  stage-2 in-ch x tap
               w3_ref, db1_ref, g3_ref, b3_ref,       # [8,9],[8,1],[8,1],[8,1]
               w4_ref,                                # [8,9]  stage-4 in-ch x tap
               scal_ref,                              # [4] SMEM: cb2, bn2_g, bn2_b, db2
               out_ref):                              # [4, L] VMEM  sub-pixel phases
        masks = masks_ref[...]                                   # [9, L]

        def shift_mask(v, di, dj):
            # v evaluated at spatial offset (di-1, dj-1) with zero padding, realized on
            # the flattened (n, a, b) lane axis: XLU roll + precomputed border mask.
            s = (di - 1) * wh + (dj - 1)
            r = pltpu.roll(v, (-s) % L, 1) if (s % L) else v
            t = di * 3 + dj
            return r * masks[t:t + 1, :]

        def batchnorm(v, gamma, beta):
            # training-mode BN: per-channel batch stats over N*Hh*Wh (lanes), biased var
            mu = jnp.sum(v, axis=1, keepdims=True) * inv_cnt
            d = v - mu
            var = jnp.sum(d * d, axis=1, keepdims=True) * inv_cnt
            return d * jax.lax.rsqrt(var + EPS) * gamma + beta

        # ---- stage 1: Conv2d(1,8,3,p=1) + ReLU + MaxPool2d(2,2) + BatchNorm2d(8) ----
        # conv1 evaluated directly at the 4 pooling phases; taps were gathered
        # lane-dense in the wrapper, so each phase is one MXU matmul.
        w1 = w1_ref[...]                                         # [8, 16]
        cb1 = cb1_ref[...]                                       # [8, 1]
        pooled = None
        for ph in range(4):
            c = jnp.dot(w1, xpatch_ref[ph], preferred_element_type=jnp.float32)  # [8, L]
            c = jnp.maximum(c + cb1, 0.0)                        # bias + ReLU
            pooled = c if pooled is None else jnp.maximum(pooled, c)
        z1 = batchnorm(pooled, g1_ref[...], b1_ref[...])         # [8, L]

        # ---- stage 2: Conv2d(8,1,3,p=1) + ReLU + BatchNorm2d(1) ----
        w2 = w2_ref[...]                                         # [8, 9]
        acc = None
        for di in range(3):
            for dj in range(3):
                t = di * 3 + dj
                contrib = w2[:, t:t + 1] * shift_mask(z1, di, dj)    # one FMA, all 8 ch
                acc = contrib if acc is None else acc + contrib
        z2 = jnp.sum(acc, axis=0, keepdims=True) + scal_ref[0]   # [1, L]
        z2 = jnp.maximum(z2, 0.0)
        z2 = batchnorm(z2, scal_ref[1], scal_ref[2])
        z2b = jnp.broadcast_to(z2, (8, L))                       # hoisted sublane bcast

        # ---- stage 3: ConvTranspose2d(1,8,3,s=1,p=1) + ReLU + BatchNorm2d(8) ----
        # stride-1 transposed conv == conv with the flipped kernel (pre-flipped in wrapper)
        w3 = w3_ref[...]                                         # [8, 9]
        acc = None
        for di in range(3):
            for dj in range(3):
                t = di * 3 + dj
                contrib = w3[:, t:t + 1] * shift_mask(z2b, di, dj)
                acc = contrib if acc is None else acc + contrib
        z3 = jnp.maximum(acc + db1_ref[...], 0.0)
        z3 = batchnorm(z3, g3_ref[...], b3_ref[...])             # [8, L]

        # ---- stage 4: ConvTranspose2d(8,1,3,s=2,p=1,op=1) + Sigmoid ----
        w4 = w4_ref[...]                                         # [8, 9]
        shifted = {(da, db): shift_mask(z3, da + 1, db + 1)      # bottom/right zero pad
                   for da in range(2) for db in range(2)}
        rows = []
        for p in range(2):
            for q in range(2):
                acc = None
                for (ki, kj), (da, db) in _PHASE_TAPS[(p, q)]:
                    contrib = w4[:, ki * 3 + kj:ki * 3 + kj + 1] * shifted[(da, db)]
                    acc = contrib if acc is None else acc + contrib
                r = jnp.sum(acc, axis=0, keepdims=True) + scal_ref[3]   # [1, L]
                # sigmoid: EUP exp + EUP approximate reciprocal (no VALU Newton step)
                rows.append(pl.reciprocal(1.0 + jnp.exp(-r), approx=True))
        out_ref[...] = jnp.concatenate(rows, axis=0)             # [4, L] lane-dense store

    return kernel


# ----------------------------- wrapper -----------------------------

def autoencoder_forward(x, P):
    n, c, h, w = x.shape
    assert c == 1 and h % 2 == 0 and w % 2 == 0
    hh, wh = h // 2, w // 2
    L = n * hh * wh

    # ---- input-side glue (tiny tensors; layout plumbing only) ----
    # conv1 taps gathered per pooling phase, flattened lane-dense:
    # xpatch[p*2+q, di*3+dj, n*hh*wh + a*wh + b] = xpad[n, 2a+p+di, 2b+q+dj]
    xpad = jnp.pad(x[:, 0].astype(F32), ((0, 0), (1, 1), (1, 1)))       # [N, H+2, W+2]
    xpatch = jnp.stack([
        jnp.stack([xpad[:, p + di:p + di + 2 * hh - 1:2,
                        q + dj:q + dj + 2 * wh - 1:2].reshape(-1)
                   for di in range(3) for dj in range(3)], axis=0)
        for p in range(2) for q in range(2)], axis=0)                   # [4, 9, L]
    xpatch = jnp.pad(xpatch, ((0, 0), (0, 7), (0, 0)))                  # tap axis 9 -> 16

    # 0/1 border-validity masks for the 9 conv taps on the flattened (n, a, b) axis
    idx = np.arange(L)
    a_i = (idx // wh) % hh
    b_i = idx % wh
    masks = np.stack(
        [((a_i + di - 1 >= 0) & (a_i + di - 1 < hh) &
          (b_i + dj - 1 >= 0) & (b_i + dj - 1 < wh)).astype(np.float32)
         for di in range(3) for dj in range(3)], axis=0)                # [9, L]

    # ---- parameter repacking: per-tap weight columns / per-channel vectors ----
    w1 = jnp.pad(P['cw1'].reshape(8, 9).astype(F32), ((0, 0), (0, 7)))          # [8, 16]
    cb1 = P['cb1'].reshape(8, 1).astype(F32)
    g1 = P['bn1_g'].reshape(8, 1).astype(F32)
    b1 = P['bn1_b'].reshape(8, 1).astype(F32)
    w2 = P['cw2'][0].reshape(8, 9).astype(F32)                                  # in-ch x tap
    w3 = P['dw1'][0, :, ::-1, ::-1].reshape(8, 9).astype(F32)                   # flipped ConvT(1,8)
    db1 = P['db1'].reshape(8, 1).astype(F32)
    g3 = P['bn3_g'].reshape(8, 1).astype(F32)
    b3 = P['bn3_b'].reshape(8, 1).astype(F32)
    w4 = P['dw2'][:, 0].reshape(8, 9).astype(F32)                               # in-ch x tap
    scal = jnp.concatenate([P['cb2'], P['bn2_g'], P['bn2_b'], P['db2']]).astype(F32)   # [4]

    smem = pl.BlockSpec(memory_space=pltpu.MemorySpace.SMEM)

    def full(shape):
        if len(shape) == 2:
            return pl.BlockSpec(shape, lambda i: (0, 0))
        return pl.BlockSpec(shape, lambda i: (0, 0, 0))

    # TODO(synk): to scale N / H*W (and engage v7x's second TensorCore) the batch axis
    # needs a real grid; BatchNorm batch statistics then require a two-pass cross-tile
    # reduction on an "arbitrary" axis, and VMEM must be re-derived against 64 MiB/TC
    # on v7x (set vmem_limit_bytes).  At this size a single block is optimal.
    phases = pl.pallas_call(
        _build_kernel(n, hh, wh),
        out_shape=jax.ShapeDtypeStruct((4, L), F32),
        grid=(1,),
        in_specs=[
            full((4, 16, L)), full((9, L)),
            full((8, 16)), full((8, 1)), full((8, 1)), full((8, 1)),
            full((8, 9)),
            full((8, 9)), full((8, 1)), full((8, 1)), full((8, 1)),
            full((8, 9)),
            smem,
        ],
        out_specs=full((4, L)),
        compiler_params=pltpu.CompilerParams(dimension_semantics=("arbitrary",)),
        cost_estimate=pl.CostEstimate(flops=200_000, transcendentals=1_100,
                                      bytes_accessed=45_000),
    )(xpatch, jnp.asarray(masks), w1, cb1, g1, b1, w2, w3, db1, g3, b3, w4, scal)

    # ---- output-side glue: interleave the 4 sub-pixel phases -> [N,1,H,W] ----
    return phases.reshape(2, 2, n, hh, wh).transpose(2, 3, 0, 4, 1).reshape(n, 1, h, w)


# ----------------------------- independent numpy reference -----------------------------

def _np_conv2d(x, w, b, pad):
    n, cin, h, wd = x.shape
    cout = w.shape[0]
    xp = np.pad(x, ((0, 0), (0, 0), (pad, pad), (pad, pad)))
    ho, wo = h + 2 * pad - 2, wd + 2 * pad - 2
    out = np.zeros((n, cout, ho, wo), np.float32)
    for di in range(3):
        for dj in range(3):
            out += np.einsum('ncij,oc->noij',
                             xp[:, :, di:di + ho, dj:dj + wo], w[:, :, di, dj])
    return out + b[None, :, None, None]


def _np_conv_transpose2d(x, w, b, stride, pad, out_pad):
    n, cin, h, wd = x.shape
    cout = w.shape[1]
    ho = (h - 1) * stride - 2 * pad + 3 + out_pad
    wo = (wd - 1) * stride - 2 * pad + 3 + out_pad
    out = np.zeros((n, cout, ho, wo), np.float32)
    for b_i in range(n):
        for ci in range(cin):
            for co in range(cout):
                for i in range(h):
                    for j in range(wd):
                        for di in range(3):
                            for dj in range(3):
                                oi = i * stride - pad + di
                                oj = j * stride - pad + dj
                                if 0 <= oi < ho and 0 <= oj < wo:
                                    out[b_i, co, oi, oj] += x[b_i, ci, i, j] * w[ci, co, di, dj]
    return out + b[None, :, None, None]


def _np_bn(x, g, b):
    mu = x.mean(axis=(0, 2, 3), keepdims=True)
    var = ((x - mu) ** 2).mean(axis=(0, 2, 3), keepdims=True)
    return (x - mu) / np.sqrt(var + EPS) * g[None, :, None, None] + b[None, :, None, None]


def _np_forward(x, P):
    h = np.maximum(_np_conv2d(x, P['cw1'], P['cb1'], 1), 0.0)
    n, c, hh, ww = h.shape
    h = h.reshape(n, c, hh // 2, 2, ww // 2, 2).max(axis=(3, 5))
    h = _np_bn(h, P['bn1_g'], P['bn1_b'])
    h = np.maximum(_np_conv2d(h, P['cw2'], P['cb2'], 1), 0.0)
    h = _np_bn(h, P['bn2_g'], P['bn2_b'])
    h = np.maximum(_np_conv_transpose2d(h, P['dw1'], P['db1'], 1, 1, 0), 0.0)
    h = _np_bn(h, P['bn3_g'], P['bn3_b'])
    h = _np_conv_transpose2d(h, P['dw2'], P['db2'], 2, 1, 1)
    return 1.0 / (1.0 + np.exp(-h))


# ----------------------------- main -----------------------------

if __name__ == "__main__":
    key = jax.random.PRNGKey(0)
    k = jax.random.split(key, 9)
    # Deterministic synthetic parameters (shapes follow the nn.Module __init__).
    P = {
        'cw1': jax.random.normal(k[0], (8, 1, 3, 3), F32) * 0.3,   # Conv2d(1,8,3,p=1)
        'cb1': jax.random.normal(k[1], (8,), F32) * 0.1,
        'bn1_g': jnp.ones((8,), F32), 'bn1_b': jnp.zeros((8,), F32),
        'cw2': jax.random.normal(k[2], (1, 8, 3, 3), F32) * 0.2,   # Conv2d(8,1,3,p=1)
        'cb2': jax.random.normal(k[3], (1,), F32) * 0.1,
        'bn2_g': jnp.ones((1,), F32), 'bn2_b': jnp.zeros((1,), F32),
        'dw1': jax.random.normal(k[4], (1, 8, 3, 3), F32) * 0.3,   # ConvT(1,8,3,s=1,p=1)
        'db1': jax.random.normal(k[5], (8,), F32) * 0.1,
        'bn3_g': jnp.ones((8,), F32), 'bn3_b': jnp.zeros((8,), F32),
        'dw2': jax.random.normal(k[6], (8, 1, 3, 3), F32) * 0.2,   # ConvT(8,1,3,s=2,p=1,op=1)
        'db2': jax.random.normal(k[7], (1,), F32) * 0.1,
    }
    x = jax.random.normal(k[8], (2, 1, 16, 16), F32)

    out = jax.jit(autoencoder_forward)(x, P)
    out = jax.block_until_ready(out)
    assert out.shape == (2, 1, 16, 16), out.shape

    Pn = {name: np.asarray(v) for name, v in P.items()}
    ref = _np_forward(np.asarray(x), Pn)
    # Tolerance budget includes the EUP approximate reciprocal used for the sigmoid
    # (review item: pl.reciprocal(approx=True)); everything else is f32-exact math.
    np.testing.assert_allclose(np.asarray(out), ref, rtol=2e-3, atol=2e-3)

    print("KERNEL_OK")
</pallas_src>

<mosaic_0001>
module attributes {stable_mosaic.version = 11 : i64} {
  func.func @kernel(%arg0: i32, %arg1: memref<4x16x128xf32, #tpu.memory_space<vmem>>, %arg2: memref<9x128xf32, #tpu.memory_space<vmem>>, %arg3: memref<8x16xf32, #tpu.memory_space<vmem>>, %arg4: memref<8x1xf32, #tpu.memory_space<vmem>>, %arg5: memref<8x1xf32, #tpu.memory_space<vmem>>, %arg6: memref<8x1xf32, #tpu.memory_space<vmem>>, %arg7: memref<8x9xf32, #tpu.memory_space<vmem>>, %arg8: memref<8x9xf32, #tpu.memory_space<vmem>>, %arg9: memref<8x1xf32, #tpu.memory_space<vmem>>, %arg10: memref<8x1xf32, #tpu.memory_space<vmem>>, %arg11: memref<8x1xf32, #tpu.memory_space<vmem>>, %arg12: memref<8x9xf32, #tpu.memory_space<vmem>>, %arg13: memref<4xf32, #tpu.memory_space<smem>>, %arg14: memref<4x128xf32, #tpu.memory_space<vmem>>) attributes {dimension_semantics = [#tpu.dimension_semantics<arbitrary>], iteration_bounds = array<i64: 1>, scalar_prefetch = 0 : i64, scratch_operands = 0 : i64, tpu.core_type = #tpu.core_type<tc>, window_params = [{pipeline_mode = #tpu.pipeline_mode<synchronous>, transform_indices = @transform_0, window_bounds = array<i64: 4, 16, 128>}, {pipeline_mode = #tpu.pipeline_mode<synchronous>, transform_indices = @transform_1, window_bounds = array<i64: 9, 128>}, {pipeline_mode = #tpu.pipeline_mode<synchronous>, transform_indices = @transform_2, window_bounds = array<i64: 8, 16>}, {pipeline_mode = #tpu.pipeline_mode<synchronous>, transform_indices = @transform_3, window_bounds = array<i64: 8, 1>}, {pipeline_mode = #tpu.pipeline_mode<synchronous>, transform_indices = @transform_4, window_bounds = array<i64: 8, 1>}, {pipeline_mode = #tpu.pipeline_mode<synchronous>, transform_indices = @transform_5, window_bounds = array<i64: 8, 1>}, {pipeline_mode = #tpu.pipeline_mode<synchronous>, transform_indices = @transform_6, window_bounds = array<i64: 8, 9>}, {pipeline_mode = #tpu.pipeline_mode<synchronous>, transform_indices = @transform_7, window_bounds = array<i64: 8, 9>}, {pipeline_mode = #tpu.pipeline_mode<synchronous>, transform_indices = @transform_8, window_bounds = array<i64: 8, 1>}, {pipeline_mode = #tpu.pipeline_mode<synchronous>, transform_indices = @transform_9, window_bounds = array<i64: 8, 1>}, {pipeline_mode = #tpu.pipeline_mode<synchronous>, transform_indices = @transform_10, window_bounds = array<i64: 8, 1>}, {pipeline_mode = #tpu.pipeline_mode<synchronous>, transform_indices = @transform_11, window_bounds = array<i64: 8, 9>}, {transform_indices = @transform_12, window_bounds = array<i64: 4>}, {pipeline_mode = #tpu.pipeline_mode<synchronous>, transform_indices = @transform_13, window_bounds = array<i64: 4, 128>}]} {
    %c0 = arith.constant 0 : index
    %c0_0 = arith.constant 0 : index
    %0 = vector.load %arg2[%c0, %c0_0] : memref<9x128xf32, #tpu.memory_space<vmem>>, vector<9x128xf32>
    %c0_1 = arith.constant 0 : index
    %c0_2 = arith.constant 0 : index
    %1 = vector.load %arg3[%c0_1, %c0_2] : memref<8x16xf32, #tpu.memory_space<vmem>>, vector<8x16xf32>
    %c0_3 = arith.constant 0 : index
    %c0_4 = arith.constant 0 : index
    %2 = vector.load %arg4[%c0_3, %c0_4] : memref<8x1xf32, #tpu.memory_space<vmem>>, vector<8x1xf32>
    %c0_5 = arith.constant 0 : index
    %c0_6 = arith.constant 0 : index
    %c0_7 = arith.constant 0 : index
    %3 = vector.load %arg1[%c0_5, %c0_6, %c0_7] : memref<4x16x128xf32, #tpu.memory_space<vmem>>, vector<1x16x128xf32>
    %4 = vector.shape_cast %3 : vector<1x16x128xf32> to vector<16x128xf32>
    %cst = arith.constant dense<0.000000e+00> : vector<8x128xf32>
    %5 = tpu.matmul %1, %4, %cst {dimension_numbers = #tpu.dot_dimension_numbers<[1], [0], [0], [1], [0, 0, 1, 1], [], []>} : vector<8x16xf32>, vector<16x128xf32>, vector<8x128xf32> -> vector<8x128xf32>
    %6 = vector.broadcast %2 : vector<8x1xf32> to vector<8x128xf32>
    %7 = arith.addf %5, %6 : vector<8x128xf32>
    %cst_8 = arith.constant 0.000000e+00 : f32
    %8 = vector.broadcast %cst_8 : f32 to vector<8x128xf32>
    %9 = arith.maximumf %7, %8 : vector<8x128xf32>
    %c1 = arith.constant 1 : index
    %c0_9 = arith.constant 0 : index
    %c0_10 = arith.constant 0 : index
    %10 = vector.load %arg1[%c1, %c0_9, %c0_10] : memref<4x16x128xf32, #tpu.memory_space<vmem>>, vector<1x16x128xf32>
    %11 = vector.shape_cast %10 : vector<1x16x128xf32> to vector<16x128xf32>
    %cst_11 = arith.constant dense<0.000000e+00> : vector<8x128xf32>
    %12 = tpu.matmul %1, %11, %cst_11 {dimension_numbers = #tpu.dot_dimension_numbers<[1], [0], [0], [1], [0, 0, 1, 1], [], []>} : vector<8x16xf32>, vector<16x128xf32>, vector<8x128xf32> -> vector<8x128xf32>
    %13 = vector.broadcast %2 : vector<8x1xf32> to vector<8x128xf32>
    %14 = arith.addf %12, %13 : vector<8x128xf32>
    %cst_12 = arith.constant 0.000000e+00 : f32
    %15 = vector.broadcast %cst_12 : f32 to vector<8x128xf32>
    %16 = arith.maximumf %14, %15 : vector<8x128xf32>
    %17 = arith.maximumf %9, %16 : vector<8x128xf32>
    %c2 = arith.constant 2 : index
    %c0_13 = arith.constant 0 : index
    %c0_14 = arith.constant 0 : index
    %18 = vector.load %arg1[%c2, %c0_13, %c0_14] : memref<4x16x128xf32, #tpu.memory_space<vmem>>, vector<1x16x128xf32>
    %19 = vector.shape_cast %18 : vector<1x16x128xf32> to vector<16x128xf32>
    %cst_15 = arith.constant dense<0.000000e+00> : vector<8x128xf32>
    %20 = tpu.matmul %1, %19, %cst_15 {dimension_numbers = #tpu.dot_dimension_numbers<[1], [0], [0], [1], [0, 0, 1, 1], [], []>} : vector<8x16xf32>, vector<16x128xf32>, vector<8x128xf32> -> vector<8x128xf32>
    %21 = vector.broadcast %2 : vector<8x1xf32> to vector<8x128xf32>
    %22 = arith.addf %20, %21 : vector<8x128xf32>
    %cst_16 = arith.constant 0.000000e+00 : f32
    %23 = vector.broadcast %cst_16 : f32 to vector<8x128xf32>
    %24 = arith.maximumf %22, %23 : vector<8x128xf32>
    %25 = arith.maximumf %17, %24 : vector<8x128xf32>
    %c3 = arith.constant 3 : index
    %c0_17 = arith.constant 0 : index
    %c0_18 = arith.constant 0 : index
    %26 = vector.load %arg1[%c3, %c0_17, %c0_18] : memref<4x16x128xf32, #tpu.memory_space<vmem>>, vector<1x16x128xf32>
    %27 = vector.shape_cast %26 : vector<1x16x128xf32> to vector<16x128xf32>
    %cst_19 = arith.constant dense<0.000000e+00> : vector<8x128xf32>
    %28 = tpu.matmul %1, %27, %cst_19 {dimension_numbers = #tpu.dot_dimension_numbers<[1], [0], [0], [1], [0, 0, 1, 1], [], []>} : vector<8x16xf32>, vector<16x128xf32>, vector<8x128xf32> -> vector<8x128xf32>
    %29 = vector.broadcast %2 : vector<8x1xf32> to vector<8x128xf32>
    %30 = arith.addf %28, %29 : vector<8x128xf32>
    %cst_20 = arith.constant 0.000000e+00 : f32
    %31 = vector.broadcast %cst_20 : f32 to vector<8x128xf32>
    %32 = arith.maximumf %30, %31 : vector<8x128xf32>
    %33 = arith.maximumf %25, %32 : vector<8x128xf32>
    %c0_21 = arith.constant 0 : index
    %c0_22 = arith.constant 0 : index
    %34 = vector.load %arg5[%c0_21, %c0_22] : memref<8x1xf32, #tpu.memory_space<vmem>>, vector<8x1xf32>
    %c0_23 = arith.constant 0 : index
    %c0_24 = arith.constant 0 : index
    %35 = vector.load %arg6[%c0_23, %c0_24] : memref<8x1xf32, #tpu.memory_space<vmem>>, vector<8x1xf32>
    %cst_25 = arith.constant dense<0.000000e+00> : vector<8xf32>
    %36 = vector.multi_reduction <add>, %33, %cst_25 [1] : vector<8x128xf32> to vector<8xf32>
    %37 = vector.shape_cast %36 : vector<8xf32> to vector<8x1xf32>
    %cst_26 = arith.constant 7.812500e-03 : f32
    %38 = vector.broadcast %cst_26 : f32 to vector<8x1xf32>
    %39 = arith.mulf %37, %38 : vector<8x1xf32>
    %40 = vector.broadcast %39 : vector<8x1xf32> to vector<8x128xf32>
    %41 = arith.subf %33, %40 : vector<8x128xf32>
    %42 = arith.mulf %41, %41 : vector<8x128xf32>
    %cst_27 = arith.constant dense<0.000000e+00> : vector<8xf32>
    %43 = vector.multi_reduction <add>, %42, %cst_27 [1] : vector<8x128xf32> to vector<8xf32>
    %44 = vector.shape_cast %43 : vector<8xf32> to vector<8x1xf32>
    %cst_28 = arith.constant 7.812500e-03 : f32
    %45 = vector.broadcast %cst_28 : f32 to vector<8x1xf32>
    %46 = arith.mulf %44, %45 : vector<8x1xf32>
    %cst_29 = arith.constant 9.99999974E-6 : f32
    %47 = vector.broadcast %cst_29 : f32 to vector<8x1xf32>
    %48 = arith.addf %46, %47 : vector<8x1xf32>
    %49 = math.rsqrt %48 : vector<8x1xf32>
    %50 = vector.broadcast %49 : vector<8x1xf32> to vector<8x128xf32>
    %51 = arith.mulf %41, %50 : vector<8x128xf32>
    %52 = vector.broadcast %34 : vector<8x1xf32> to vector<8x128xf32>
    %53 = arith.mulf %51, %52 : vector<8x128xf32>
    %54 = vector.broadcast %35 : vector<8x1xf32> to vector<8x128xf32>
    %55 = arith.addf %53, %54 : vector<8x128xf32>
    %c0_30 = arith.constant 0 : index
    %c0_31 = arith.constant 0 : index
    %56 = vector.load %arg7[%c0_30, %c0_31] : memref<8x9xf32, #tpu.memory_space<vmem>>, vector<8x9xf32>
    %57 = vector.extract_strided_slice %56 {offsets = [0, 0], sizes = [8, 1], strides = [1, 1]} : vector<8x9xf32> to vector<8x1xf32>
    %c9_i32 = arith.constant 9 : i32
    %58 = tpu.dynamic_rotate %55 by %c9_i32 dim 1 : vector<8x128xf32>, i32 -> vector<8x128xf32>
    %59 = vector.extract_strided_slice %0 {offsets = [0, 0], sizes = [1, 128], strides = [1, 1]} : vector<9x128xf32> to vector<1x128xf32>
    %60 = vector.broadcast %59 : vector<1x128xf32> to vector<8x128xf32>
    %61 = arith.mulf %58, %60 : vector<8x128xf32>
    %62 = vector.broadcast %57 : vector<8x1xf32> to vector<8x128xf32>
    %63 = arith.mulf %62, %61 : vector<8x128xf32>
    %64 = vector.extract_strided_slice %56 {offsets = [0, 1], sizes = [8, 1], strides = [1, 1]} : vector<8x9xf32> to vector<8x1xf32>
    %c8_i32 = arith.constant 8 : i32
    %65 = tpu.dynamic_rotate %55 by %c8_i32 dim 1 : vector<8x128xf32>, i32 -> vector<8x128xf32>
    %66 = vector.extract_strided_slice %0 {offsets = [1, 0], sizes = [1, 128], strides = [1, 1]} : vector<9x128xf32> to vector<1x128xf32>
    %67 = vector.broadcast %66 : vector<1x128xf32> to vector<8x128xf32>
    %68 = arith.mulf %65, %67 : vector<8x128xf32>
    %69 = vector.broadcast %64 : vector<8x1xf32> to vector<8x128xf32>
    %70 = arith.mulf %69, %68 : vector<8x128xf32>
    %71 = arith.addf %63, %70 : vector<8x128xf32>
    %72 = vector.extract_strided_slice %56 {offsets = [0, 2], sizes = [8, 1], strides = [1, 1]} : vector<8x9xf32> to vector<8x1xf32>
    %c7_i32 = arith.constant 7 : i32
    %73 = tpu.dynamic_rotate %55 by %c7_i32 dim 1 : vector<8x128xf32>, i32 -> vector<8x128xf32>
    %74 = vector.extract_strided_slice %0 {offsets = [2, 0], sizes = [1, 128], strides = [1, 1]} : vector<9x128xf32> to vector<1x128xf32>
    %75 = vector.broadcast %74 : vector<1x128xf32> to vector<8x128xf32>
    %76 = arith.mulf %73, %75 : vector<8x128xf32>
    %77 = vector.broadcast %72 : vector<8x1xf32> to vector<8x128xf32>
    %78 = arith.mulf %77, %76 : vector<8x128xf32>
    %79 = arith.addf %71, %78 : vector<8x128xf32>
    %80 = vector.extract_strided_slice %56 {offsets = [0, 3], sizes = [8, 1], strides = [1, 1]} : vector<8x9xf32> to vector<8x1xf32>
    %c1_i32 = arith.constant 1 : i32
    %81 = tpu.dynamic_rotate %55 by %c1_i32 dim 1 : vector<8x128xf32>, i32 -> vector<8x128xf32>
    %82 = vector.extract_strided_slice %0 {offsets = [3, 0], sizes = [1, 128], strides = [1, 1]} : vector<9x128xf32> to vector<1x128xf32>
    %83 = vector.broadcast %82 : vector<1x128xf32> to vector<8x128xf32>
    %84 = arith.mulf %81, %83 : vector<8x128xf32>
    %85 = vector.broadcast %80 : vector<8x1xf32> to vector<8x128xf32>
    %86 = arith.mulf %85, %84 : vector<8x128xf32>
    %87 = arith.addf %79, %86 : vector<8x128xf32>
    %88 = vector.extract_strided_slice %56 {offsets = [0, 4], sizes = [8, 1], strides = [1, 1]} : vector<8x9xf32> to vector<8x1xf32>
    %89 = vector.extract_strided_slice %0 {offsets = [4, 0], sizes = [1, 128], strides = [1, 1]} : vector<9x128xf32> to vector<1x128xf32>
    %90 = vector.broadcast %89 : vector<1x128xf32> to vector<8x128xf32>
    %91 = arith.mulf %55, %90 : vector<8x128xf32>
    %92 = vector.broadcast %88 : vector<8x1xf32> to vector<8x128xf32>
    %93 = arith.mulf %92, %91 : vector<8x128xf32>
    %94 = arith.addf %87, %93 : vector<8x128xf32>
    %95 = vector.extract_strided_slice %56 {offsets = [0, 5], sizes = [8, 1], strides = [1, 1]} : vector<8x9xf32> to vector<8x1xf32>
    %c127_i32 = arith.constant 127 : i32
    %96 = tpu.dynamic_rotate %55 by %c127_i32 dim 1 : vector<8x128xf32>, i32 -> vector<8x128xf32>
    %97 = vector.extract_strided_slice %0 {offsets = [5, 0], sizes = [1, 128], strides = [1, 1]} : vector<9x128xf32> to vector<1x128xf32>
    %98 = vector.broadcast %97 : vector<1x128xf32> to vector<8x128xf32>
    %99 = arith.mulf %96, %98 : vector<8x128xf32>
    %100 = vector.broadcast %95 : vector<8x1xf32> to vector<8x128xf32>
    %101 = arith.mulf %100, %99 : vector<8x128xf32>
    %102 = arith.addf %94, %101 : vector<8x128xf32>
    %103 = vector.extract_strided_slice %56 {offsets = [0, 6], sizes = [8, 1], strides = [1, 1]} : vector<8x9xf32> to vector<8x1xf32>
    %c121_i32 = arith.constant 121 : i32
    %104 = tpu.dynamic_rotate %55 by %c121_i32 dim 1 : vector<8x128xf32>, i32 -> vector<8x128xf32>
    %105 = vector.extract_strided_slice %0 {offsets = [6, 0], sizes = [1, 128], strides = [1, 1]} : vector<9x128xf32> to vector<1x128xf32>
    %106 = vector.broadcast %105 : vector<1x128xf32> to vector<8x128xf32>
    %107 = arith.mulf %104, %106 : vector<8x128xf32>
    %108 = vector.broadcast %103 : vector<8x1xf32> to vector<8x128xf32>
    %109 = arith.mulf %108, %107 : vector<8x128xf32>
    %110 = arith.addf %102, %109 : vector<8x128xf32>
    %111 = vector.extract_strided_slice %56 {offsets = [0, 7], sizes = [8, 1], strides = [1, 1]} : vector<8x9xf32> to vector<8x1xf32>
    %c120_i32 = arith.constant 120 : i32
    %112 = tpu.dynamic_rotate %55 by %c120_i32 dim 1 : vector<8x128xf32>, i32 -> vector<8x128xf32>
    %113 = vector.extract_strided_slice %0 {offsets = [7, 0], sizes = [1, 128], strides = [1, 1]} : vector<9x128xf32> to vector<1x128xf32>
    %114 = vector.broadcast %113 : vector<1x128xf32> to vector<8x128xf32>
    %115 = arith.mulf %112, %114 : vector<8x128xf32>
    %116 = vector.broadcast %111 : vector<8x1xf32> to vector<8x128xf32>
    %117 = arith.mulf %116, %115 : vector<8x128xf32>
    %118 = arith.addf %110, %117 : vector<8x128xf32>
    %119 = vector.extract_strided_slice %56 {offsets = [0, 8], sizes = [8, 1], strides = [1, 1]} : vector<8x9xf32> to vector<8x1xf32>
    %c119_i32 = arith.constant 119 : i32
    %120 = tpu.dynamic_rotate %55 by %c119_i32 dim 1 : vector<8x128xf32>, i32 -> vector<8x128xf32>
    %121 = vector.extract_strided_slice %0 {offsets = [8, 0], sizes = [1, 128], strides = [1, 1]} : vector<9x128xf32> to vector<1x128xf32>
    %122 = vector.broadcast %121 : vector<1x128xf32> to vector<8x128xf32>
    %123 = arith.mulf %120, %122 : vector<8x128xf32>
    %124 = vector.broadcast %119 : vector<8x1xf32> to vector<8x128xf32>
    %125 = arith.mulf %124, %123 : vector<8x128xf32>
    %126 = arith.addf %118, %125 : vector<8x128xf32>
    %cst_32 = arith.constant dense<0.000000e+00> : vector<128xf32>
    %127 = vector.multi_reduction <add>, %126, %cst_32 [0] : vector<8x128xf32> to vector<128xf32>
    %128 = vector.shape_cast %127 : vector<128xf32> to vector<1x128xf32>
    %c0_33 = arith.constant 0 : index
    %129 = memref.load %arg13[%c0_33] : memref<4xf32, #tpu.memory_space<smem>>
    %130 = vector.broadcast %129 : f32 to vector<1x128xf32>
    %131 = arith.addf %128, %130 : vector<1x128xf32>
    %cst_34 = arith.constant 0.000000e+00 : f32
    %132 = vector.broadcast %cst_34 : f32 to vector<1x128xf32>
    %133 = arith.maximumf %131, %132 : vector<1x128xf32>
    %c1_35 = arith.constant 1 : index
    %134 = memref.load %arg13[%c1_35] : memref<4xf32, #tpu.memory_space<smem>>
    %c2_36 = arith.constant 2 : index
    %135 = memref.load %arg13[%c2_36] : memref<4xf32, #tpu.memory_space<smem>>
    %cst_37 = arith.constant dense<0.000000e+00> : vector<1xf32>
    %136 = vector.multi_reduction <add>, %133, %cst_37 [1] : vector<1x128xf32> to vector<1xf32>
    %137 = vector.shape_cast %136 : vector<1xf32> to vector<1x1xf32>
    %cst_38 = arith.constant 7.812500e-03 : f32
    %138 = vector.broadcast %cst_38 : f32 to vector<1x1xf32>
    %139 = arith.mulf %137, %138 : vector<1x1xf32>
    %140 = vector.broadcast %139 : vector<1x1xf32> to vector<1x128xf32>
    %141 = arith.subf %133, %140 : vector<1x128xf32>
    %142 = arith.mulf %141, %141 : vector<1x128xf32>
    %cst_39 = arith.constant dense<0.000000e+00> : vector<1xf32>
    %143 = vector.multi_reduction <add>, %142, %cst_39 [1] : vector<1x128xf32> to vector<1xf32>
    %144 = vector.shape_cast %143 : vector<1xf32> to vector<1x1xf32>
    %cst_40 = arith.constant 7.812500e-03 : f32
    %145 = vector.broadcast %cst_40 : f32 to vector<1x1xf32>
    %146 = arith.mulf %144, %145 : vector<1x1xf32>
    %cst_41 = arith.constant 9.99999974E-6 : f32
    %147 = vector.broadcast %cst_41 : f32 to vector<1x1xf32>
    %148 = arith.addf %146, %147 : vector<1x1xf32>
    %149 = math.rsqrt %148 : vector<1x1xf32>
    %150 = vector.broadcast %149 : vector<1x1xf32> to vector<1x128xf32>
    %151 = arith.mulf %141, %150 : vector<1x128xf32>
    %152 = vector.broadcast %134 : f32 to vector<1x128xf32>
    %153 = arith.mulf %151, %152 : vector<1x128xf32>
    %154 = vector.broadcast %135 : f32 to vector<1x128xf32>
    %155 = arith.addf %153, %154 : vector<1x128xf32>
    %156 = vector.shape_cast %155 : vector<1x128xf32> to vector<1x128xf32>
    %157 = vector.broadcast %156 : vector<1x128xf32> to vector<8x128xf32>
    %c0_42 = arith.constant 0 : index
    %c0_43 = arith.constant 0 : index
    %158 = vector.load %arg8[%c0_42, %c0_43] : memref<8x9xf32, #tpu.memory_space<vmem>>, vector<8x9xf32>
    %159 = vector.extract_strided_slice %158 {offsets = [0, 0], sizes = [8, 1], strides = [1, 1]} : vector<8x9xf32> to vector<8x1xf32>
    %c9_i32_44 = arith.constant 9 : i32
    %160 = tpu.dynamic_rotate %157 by %c9_i32_44 dim 1 : vector<8x128xf32>, i32 -> vector<8x128xf32>
    %161 = vector.extract_strided_slice %0 {offsets = [0, 0], sizes = [1, 128], strides = [1, 1]} : vector<9x128xf32> to vector<1x128xf32>
    %162 = vector.broadcast %161 : vector<1x128xf32> to vector<8x128xf32>
    %163 = arith.mulf %160, %162 : vector<8x128xf32>
    %164 = vector.broadcast %159 : vector<8x1xf32> to vector<8x128xf32>
    %165 = arith.mulf %164, %163 : vector<8x128xf32>
    %166 = vector.extract_strided_slice %158 {offsets = [0, 1], sizes = [8, 1], strides = [1, 1]} : vector<8x9xf32> to vector<8x1xf32>
    %c8_i32_45 = arith.constant 8 : i32
    %167 = tpu.dynamic_rotate %157 by %c8_i32_45 dim 1 : vector<8x128xf32>, i32 -> vector<8x128xf32>
    %168 = vector.extract_strided_slice %0 {offsets = [1, 0], sizes = [1, 128], strides = [1, 1]} : vector<9x128xf32> to vector<1x128xf32>
    %169 = vector.broadcast %168 : vector<1x128xf32> to vector<8x128xf32>
    %170 = arith.mulf %167, %169 : vector<8x128xf32>
    %171 = vector.broadcast %166 : vector<8x1xf32> to vector<8x128xf32>
    %172 = arith.mulf %171, %170 : vector<8x128xf32>
    %173 = arith.addf %165, %172 : vector<8x128xf32>
    %174 = vector.extract_strided_slice %158 {offsets = [0, 2], sizes = [8, 1], strides = [1, 1]} : vector<8x9xf32> to vector<8x1xf32>
    %c7_i32_46 = arith.constant 7 : i32
    %175 = tpu.dynamic_rotate %157 by %c7_i32_46 dim 1 : vector<8x128xf32>, i32 -> vector<8x128xf32>
    %176 = vector.extract_strided_slice %0 {offsets = [2, 0], sizes = [1, 128], strides = [1, 1]} : vector<9x128xf32> to vector<1x128xf32>
    %177 = vector.broadcast %176 : vector<1x128xf32> to vector<8x128xf32>
    %178 = arith.mulf %175, %177 : vector<8x128xf32>
    %179 = vector.broadcast %174 : vector<8x1xf32> to vector<8x128xf32>
    %180 = arith.mulf %179, %178 : vector<8x128xf32>
    %181 = arith.addf %173, %180 : vector<8x128xf32>
    %182 = vector.extract_strided_slice %158 {offsets = [0, 3], sizes = [8, 1], strides = [1, 1]} : vector<8x9xf32> to vector<8x1xf32>
    %c1_i32_47 = arith.constant 1 : i32
    %183 = tpu.dynamic_rotate %157 by %c1_i32_47 dim 1 : vector<8x128xf32>, i32 -> vector<8x128xf32>
    %184 = vector.extract_strided_slice %0 {offsets = [3, 0], sizes = [1, 128], strides = [1, 1]} : vector<9x128xf32> to vector<1x128xf32>
    %185 = vector.broadcast %184 : vector<1x128xf32> to vector<8x128xf32>
    %186 = arith.mulf %183, %185 : vector<8x128xf32>
    %187 = vector.broadcast %182 : vector<8x1xf32> to vector<8x128xf32>
    %188 = arith.mulf %187, %186 : vector<8x128xf32>
    %189 = arith.addf %181, %188 : vector<8x128xf32>
    %190 = vector.extract_strided_slice %158 {offsets = [0, 4], sizes = [8, 1], strides = [1, 1]} : vector<8x9xf32> to vector<8x1xf32>
    %191 = vector.extract_strided_slice %0 {offsets = [4, 0], sizes = [1, 128], strides = [1, 1]} : vector<9x128xf32> to vector<1x128xf32>
    %192 = vector.broadcast %191 : vector<1x128xf32> to vector<8x128xf32>
    %193 = arith.mulf %157, %192 : vector<8x128xf32>
    %194 = vector.broadcast %190 : vector<8x1xf32> to vector<8x128xf32>
    %195 = arith.mulf %194, %193 : vector<8x128xf32>
    %196 = arith.addf %189, %195 : vector<8x128xf32>
    %197 = vector.extract_strided_slice %158 {offsets = [0, 5], sizes = [8, 1], strides = [1, 1]} : vector<8x9xf32> to vector<8x1xf32>
    %c127_i32_48 = arith.constant 127 : i32
    %198 = tpu.dynamic_rotate %157 by %c127_i32_48 dim 1 : vector<8x128xf32>, i32 -> vector<8x128xf32>
    %199 = vector.extract_strided_slice %0 {offsets = [5, 0], sizes = [1, 128], strides = [1, 1]} : vector<9x128xf32> to vector<1x128xf32>
    %200 = vector.broadcast %199 : vector<1x128xf32> to vector<8x128xf32>
    %201 = arith.mulf %198, %200 : vector<8x128xf32>
    %202 = vector.broadcast %197 : vector<8x1xf32> to vector<8x128xf32>
    %203 = arith.mulf %202, %201 : vector<8x128xf32>
    %204 = arith.addf %196, %203 : vector<8x128xf32>
    %205 = vector.extract_strided_slice %158 {offsets = [0, 6], sizes = [8, 1], strides = [1, 1]} : vector<8x9xf32> to vector<8x1xf32>
    %c121_i32_49 = arith.constant 121 : i32
    %206 = tpu.dynamic_rotate %157 by %c121_i32_49 dim 1 : vector<8x128xf32>, i32 -> vector<8x128xf32>
    %207 = vector.extract_strided_slice %0 {offsets = [6, 0], sizes = [1, 128], strides = [1, 1]} : vector<9x128xf32> to vector<1x128xf32>
    %208 = vector.broadcast %207 : vector<1x128xf32> to vector<8x128xf32>
    %209 = arith.mulf %206, %208 : vector<8x128xf32>
    %210 = vector.broadcast %205 : vector<8x1xf32> to vector<8x128xf32>
    %211 = arith.mulf %210, %209 : vector<8x128xf32>
    %212 = arith.addf %204, %211 : vector<8x128xf32>
    %213 = vector.extract_strided_slice %158 {offsets = [0, 7], sizes = [8, 1], strides = [1, 1]} : vector<8x9xf32> to vector<8x1xf32>
    %c120_i32_50 = arith.constant 120 : i32
    %214 = tpu.dynamic_rotate %157 by %c120_i32_50 dim 1 : vector<8x128xf32>, i32 -> vector<8x128xf32>
    %215 = vector.extract_strided_slice %0 {offsets = [7, 0], sizes = [1, 128], strides = [1, 1]} : vector<9x128xf32> to vector<1x128xf32>
    %216 = vector.broadcast %215 : vector<1x128xf32> to vector<8x128xf32>
    %217 = arith.mulf %214, %216 : vector<8x128xf32>
    %218 = vector.broadcast %213 : vector<8x1xf32> to vector<8x128xf32>
    %219 = arith.mulf %218, %217 : vector<8x128xf32>
    %220 = arith.addf %212, %219 : vector<8x128xf32>
    %221 = vector.extract_strided_slice %158 {offsets = [0, 8], sizes = [8, 1], strides = [1, 1]} : vector<8x9xf32> to vector<8x1xf32>
    %c119_i32_51 = arith.constant 119 : i32
    %222 = tpu.dynamic_rotate %157 by %c119_i32_51 dim 1 : vector<8x128xf32>, i32 -> vector<8x128xf32>
    %223 = vector.extract_strided_slice %0 {offsets = [8, 0], sizes = [1, 128], strides = [1, 1]} : vector<9x128xf32> to vector<1x128xf32>
    %224 = vector.broadcast %223 : vector<1x128xf32> to vector<8x128xf32>
    %225 = arith.mulf %222, %224 : vector<8x128xf32>
    %226 = vector.broadcast %221 : vector<8x1xf32> to vector<8x128xf32>
    %227 = arith.mulf %226, %225 : vector<8x128xf32>
    %228 = arith.addf %220, %227 : vector<8x128xf32>
    %c0_52 = arith.constant 0 : index
    %c0_53 = arith.constant 0 : index
    %229 = vector.load %arg9[%c0_52, %c0_53] : memref<8x1xf32, #tpu.memory_space<vmem>>, vector<8x1xf32>
    %230 = vector.broadcast %229 : vector<8x1xf32> to vector<8x128xf32>
    %231 = arith.addf %228, %230 : vector<8x128xf32>
    %cst_54 = arith.constant 0.000000e+00 : f32
    %232 = vector.broadcast %cst_54 : f32 to vector<8x128xf32>
    %233 = arith.maximumf %231, %232 : vector<8x128xf32>
    %c0_55 = arith.constant 0 : index
    %c0_56 = arith.constant 0 : index
    %234 = vector.load %arg10[%c0_55, %c0_56] : memref<8x1xf32, #tpu.memory_space<vmem>>, vector<8x1xf32>
    %c0_57 = arith.constant 0 : index
    %c0_58 = arith.constant 0 : index
    %235 = vector.load %arg11[%c0_57, %c0_58] : memref<8x1xf32, #tpu.memory_space<vmem>>, vector<8x1xf32>
    %cst_59 = arith.constant dense<0.000000e+00> : vector<8xf32>
    %236 = vector.multi_reduction <add>, %233, %cst_59 [1] : vector<8x128xf32> to vector<8xf32>
    %237 = vector.shape_cast %236 : vector<8xf32> to vector<8x1xf32>
    %cst_60 = arith.constant 7.812500e-03 : f32
    %238 = vector.broadcast %cst_60 : f32 to vector<8x1xf32>
    %239 = arith.mulf %237, %238 : vector<8x1xf32>
    %240 = vector.broadcast %239 : vector<8x1xf32> to vector<8x128xf32>
    %241 = arith.subf %233, %240 : vector<8x128xf32>
    %242 = arith.mulf %241, %241 : vector<8x128xf32>
    %cst_61 = arith.constant dense<0.000000e+00> : vector<8xf32>
    %243 = vector.multi_reduction <add>, %242, %cst_61 [1] : vector<8x128xf32> to vector<8xf32>
    %244 = vector.shape_cast %243 : vector<8xf32> to vector<8x1xf32>
    %cst_62 = arith.constant 7.812500e-03 : f32
    %245 = vector.broadcast %cst_62 : f32 to vector<8x1xf32>
    %246 = arith.mulf %244, %245 : vector<8x1xf32>
    %cst_63 = arith.constant 9.99999974E-6 : f32
    %247 = vector.broadcast %cst_63 : f32 to vector<8x1xf32>
    %248 = arith.addf %246, %247 : vector<8x1xf32>
    %249 = math.rsqrt %248 : vector<8x1xf32>
    %250 = vector.broadcast %249 : vector<8x1xf32> to vector<8x128xf32>
    %251 = arith.mulf %241, %250 : vector<8x128xf32>
    %252 = vector.broadcast %234 : vector<8x1xf32> to vector<8x128xf32>
    %253 = arith.mulf %251, %252 : vector<8x128xf32>
    %254 = vector.broadcast %235 : vector<8x1xf32> to vector<8x128xf32>
    %255 = arith.addf %253, %254 : vector<8x128xf32>
    %c0_64 = arith.constant 0 : index
    %c0_65 = arith.constant 0 : index
    %256 = vector.load %arg12[%c0_64, %c0_65] : memref<8x9xf32, #tpu.memory_space<vmem>>, vector<8x9xf32>
    %257 = vector.extract_strided_slice %0 {offsets = [4, 0], sizes = [1, 128], strides = [1, 1]} : vector<9x128xf32> to vector<1x128xf32>
    %258 = vector.broadcast %257 : vector<1x128xf32> to vector<8x128xf32>
    %259 = arith.mulf %255, %258 : vector<8x128xf32>
    %c127_i32_66 = arith.constant 127 : i32
    %260 = tpu.dynamic_rotate %255 by %c127_i32_66 dim 1 : vector<8x128xf32>, i32 -> vector<8x128xf32>
    %261 = vector.extract_strided_slice %0 {offsets = [5, 0], sizes = [1, 128], strides = [1, 1]} : vector<9x128xf32> to vector<1x128xf32>
    %262 = vector.broadcast %261 : vector<1x128xf32> to vector<8x128xf32>
    %263 = arith.mulf %260, %262 : vector<8x128xf32>
    %c120_i32_67 = arith.constant 120 : i32
    %264 = tpu.dynamic_rotate %255 by %c120_i32_67 dim 1 : vector<8x128xf32>, i32 -> vector<8x128xf32>
    %265 = vector.extract_strided_slice %0 {offsets = [7, 0], sizes = [1, 128], strides = [1, 1]} : vector<9x128xf32> to vector<1x128xf32>
    %266 = vector.broadcast %265 : vector<1x128xf32> to vector<8x128xf32>
    %267 = arith.mulf %264, %266 : vector<8x128xf32>
    %c119_i32_68 = arith.constant 119 : i32
    %268 = tpu.dynamic_rotate %255 by %c119_i32_68 dim 1 : vector<8x128xf32>, i32 -> vector<8x128xf32>
    %269 = vector.extract_strided_slice %0 {offsets = [8, 0], sizes = [1, 128], strides = [1, 1]} : vector<9x128xf32> to vector<1x128xf32>
    %270 = vector.broadcast %269 : vector<1x128xf32> to vector<8x128xf32>
    %271 = arith.mulf %268, %270 : vector<8x128xf32>
    %272 = vector.extract_strided_slice %256 {offsets = [0, 4], sizes = [8, 1], strides = [1, 1]} : vector<8x9xf32> to vector<8x1xf32>
    %273 = vector.broadcast %272 : vector<8x1xf32> to vector<8x128xf32>
    %274 = arith.mulf %273, %259 : vector<8x128xf32>
    %cst_69 = arith.constant dense<0.000000e+00> : vector<128xf32>
    %275 = vector.multi_reduction <add>, %274, %cst_69 [0] : vector<8x128xf32> to vector<128xf32>
    %276 = vector.shape_cast %275 : vector<128xf32> to vector<1x128xf32>
    %c3_70 = arith.constant 3 : index
    %277 = memref.load %arg13[%c3_70] : memref<4xf32, #tpu.memory_space<smem>>
    %278 = vector.broadcast %277 : f32 to vector<1x128xf32>
    %279 = arith.addf %276, %278 : vector<1x128xf32>
    %cst_71 = arith.constant 0.000000e+00 : f32
    %280 = vector.broadcast %cst_71 : f32 to vector<1x128xf32>
    %281 = arith.subf %280, %279 : vector<1x128xf32>
    %282 = math.exp %281 : vector<1x128xf32>
    %cst_72 = arith.constant 1.000000e+00 : f32
    %283 = vector.broadcast %cst_72 : f32 to vector<1x128xf32>
    %284 = arith.addf %283, %282 : vector<1x128xf32>
    %285 = tpu.reciprocal %284 {approx = true} : vector<1x128xf32> -> vector<1x128xf32>
    %286 = vector.extract_strided_slice %256 {offsets = [0, 5], sizes = [8, 1], strides = [1, 1]} : vector<8x9xf32> to vector<8x1xf32>
    %287 = vector.broadcast %286 : vector<8x1xf32> to vector<8x128xf32>
    %288 = arith.mulf %287, %259 : vector<8x128xf32>
    %289 = vector.extract_strided_slice %256 {offsets = [0, 3], sizes = [8, 1], strides = [1, 1]} : vector<8x9xf32> to vector<8x1xf32>
    %290 = vector.broadcast %289 : vector<8x1xf32> to vector<8x128xf32>
    %291 = arith.mulf %290, %263 : vector<8x128xf32>
    %292 = arith.addf %288, %291 : vector<8x128xf32>
    %cst_73 = arith.constant dense<0.000000e+00> : vector<128xf32>
    %293 = vector.multi_reduction <add>, %292, %cst_73 [0] : vector<8x128xf32> to vector<128xf32>
    %294 = vector.shape_cast %293 : vector<128xf32> to vector<1x128xf32>
    %c3_74 = arith.constant 3 : index
    %295 = memref.load %arg13[%c3_74] : memref<4xf32, #tpu.memory_space<smem>>
    %296 = vector.broadcast %295 : f32 to vector<1x128xf32>
    %297 = arith.addf %294, %296 : vector<1x128xf32>
    %cst_75 = arith.constant 0.000000e+00 : f32
    %298 = vector.broadcast %cst_75 : f32 to vector<1x128xf32>
    %299 = arith.subf %298, %297 : vector<1x128xf32>
    %300 = math.exp %299 : vector<1x128xf32>
    %cst_76 = arith.constant 1.000000e+00 : f32
    %301 = vector.broadcast %cst_76 : f32 to vector<1x128xf32>
    %302 = arith.addf %301, %300 : vector<1x128xf32>
    %303 = tpu.reciprocal %302 {approx = true} : vector<1x128xf32> -> vector<1x128xf32>
    %304 = vector.extract_strided_slice %256 {offsets = [0, 7], sizes = [8, 1], strides = [1, 1]} : vector<8x9xf32> to vector<8x1xf32>
    %305 = vector.broadcast %304 : vector<8x1xf32> to vector<8x128xf32>
    %306 = arith.mulf %305, %259 : vector<8x128xf32>
    %307 = vector.extract_strided_slice %256 {offsets = [0, 1], sizes = [8, 1], strides = [1, 1]} : vector<8x9xf32> to vector<8x1xf32>
    %308 = vector.broadcast %307 : vector<8x1xf32> to vector<8x128xf32>
    %309 = arith.mulf %308, %267 : vector<8x128xf32>
    %310 = arith.addf %306, %309 : vector<8x128xf32>
    %cst_77 = arith.constant dense<0.000000e+00> : vector<128xf32>
    %311 = vector.multi_reduction <add>, %310, %cst_77 [0] : vector<8x128xf32> to vector<128xf32>
    %312 = vector.shape_cast %311 : vector<128xf32> to vector<1x128xf32>
    %c3_78 = arith.constant 3 : index
    %313 = memref.load %arg13[%c3_78] : memref<4xf32, #tpu.memory_space<smem>>
    %314 = vector.broadcast %313 : f32 to vector<1x128xf32>
    %315 = arith.addf %312, %314 : vector<1x128xf32>
    %cst_79 = arith.constant 0.000000e+00 : f32
    %316 = vector.broadcast %cst_79 : f32 to vector<1x128xf32>
    %317 = arith.subf %316, %315 : vector<1x128xf32>
    %318 = math.exp %317 : vector<1x128xf32>
    %cst_80 = arith.constant 1.000000e+00 : f32
    %319 = vector.broadcast %cst_80 : f32 to vector<1x128xf32>
    %320 = arith.addf %319, %318 : vector<1x128xf32>
    %321 = tpu.reciprocal %320 {approx = true} : vector<1x128xf32> -> vector<1x128xf32>
    %322 = vector.extract_strided_slice %256 {offsets = [0, 8], sizes = [8, 1], strides = [1, 1]} : vector<8x9xf32> to vector<8x1xf32>
    %323 = vector.broadcast %322 : vector<8x1xf32> to vector<8x128xf32>
    %324 = arith.mulf %323, %259 : vector<8x128xf32>
    %325 = vector.extract_strided_slice %256 {offsets = [0, 6], sizes = [8, 1], strides = [1, 1]} : vector<8x9xf32> to vector<8x1xf32>
    %326 = vector.broadcast %325 : vector<8x1xf32> to vector<8x128xf32>
    %327 = arith.mulf %326, %263 : vector<8x128xf32>
    %328 = arith.addf %324, %327 : vector<8x128xf32>
    %329 = vector.extract_strided_slice %256 {offsets = [0, 2], sizes = [8, 1], strides = [1, 1]} : vector<8x9xf32> to vector<8x1xf32>
    %330 = vector.broadcast %329 : vector<8x1xf32> to vector<8x128xf32>
    %331 = arith.mulf %330, %267 : vector<8x128xf32>
    %332 = arith.addf %328, %331 : vector<8x128xf32>
    %333 = vector.extract_strided_slice %256 {offsets = [0, 0], sizes = [8, 1], strides = [1, 1]} : vector<8x9xf32> to vector<8x1xf32>
    %334 = vector.broadcast %333 : vector<8x1xf32> to vector<8x128xf32>
    %335 = arith.mulf %334, %271 : vector<8x128xf32>
    %336 = arith.addf %332, %335 : vector<8x128xf32>
    %cst_81 = arith.constant dense<0.000000e+00> : vector<128xf32>
    %337 = vector.multi_reduction <add>, %336, %cst_81 [0] : vector<8x128xf32> to vector<128xf32>
    %338 = vector.shape_cast %337 : vector<128xf32> to vector<1x128xf32>
    %c3_82 = arith.constant 3 : index
    %339 = memref.load %arg13[%c3_82] : memref<4xf32, #tpu.memory_space<smem>>
    %340 = vector.broadcast %339 : f32 to vector<1x128xf32>
    %341 = arith.addf %338, %340 : vector<1x128xf32>
    %cst_83 = arith.constant 0.000000e+00 : f32
    %342 = vector.broadcast %cst_83 : f32 to vector<1x128xf32>
    %343 = arith.subf %342, %341 : vector<1x128xf32>
    %344 = math.exp %343 : vector<1x128xf32>
    %cst_84 = arith.constant 1.000000e+00 : f32
    %345 = vector.broadcast %cst_84 : f32 to vector<1x128xf32>
    %346 = arith.addf %345, %344 : vector<1x128xf32>
    %347 = tpu.reciprocal %346 {approx = true} : vector<1x128xf32> -> vector<1x128xf32>
    %348 = tpu.concatenate %285, %303, %321, %347 in 0 : vector<1x128xf32>, vector<1x128xf32>, vector<1x128xf32>, vector<1x128xf32> -> vector<4x128xf32>
    %c0_85 = arith.constant 0 : index
    %c0_86 = arith.constant 0 : index
    %349 = vector.load %arg14[%c0_85, %c0_86] : memref<4x128xf32, #tpu.memory_space<vmem>>, vector<4x128xf32>
    tpu.vector_store %arg14[%c0_85, %c0_86], %348 {strides = array<i32>} : memref<4x128xf32, #tpu.memory_space<vmem>>, vector<4x128xf32>,
    return
  }
  func.func @transform_0(%arg0: i32) -> (i32, i32, i32) {
    %c0_i32 = arith.constant 0 : i32
    %c0_i32_0 = arith.constant 0 : i32
    %c0_i32_1 = arith.constant 0 : i32
    %c0_i32_2 = arith.constant 0 : i32
    return %c0_i32, %c0_i32_0, %c0_i32_1 : i32, i32, i32
  }
  func.func @transform_1(%arg0: i32) -> (i32, i32) {
    %c0_i32 = arith.constant 0 : i32
    %c0_i32_0 = arith.constant 0 : i32
    %c0_i32_1 = arith.constant 0 : i32
    return %c0_i32, %c0_i32_0 : i32, i32
  }
  func.func @transform_2(%arg0: i32) -> (i32, i32) {
    %c0_i32 = arith.constant 0 : i32
    %c0_i32_0 = arith.constant 0 : i32
    %c0_i32_1 = arith.constant 0 : i32
    return %c0_i32, %c0_i32_0 : i32, i32
  }
  func.func @transform_3(%arg0: i32) -> (i32, i32) {
    %c0_i32 = arith.constant 0 : i32
    %c0_i32_0 = arith.constant 0 : i32
    %c0_i32_1 = arith.constant 0 : i32
    return %c0_i32, %c0_i32_0 : i32, i32
  }
  func.func @transform_4(%arg0: i32) -> (i32, i32) {
    %c0_i32 = arith.constant 0 : i32
    %c0_i32_0 = arith.constant 0 : i32
    %c0_i32_1 = arith.constant 0 : i32
    return %c0_i32, %c0_i32_0 : i32, i32
  }
  func.func @transform_5(%arg0: i32) -> (i32, i32) {
    %c0_i32 = arith.constant 0 : i32
    %c0_i32_0 = arith.constant 0 : i32
    %c0_i32_1 = arith.constant 0 : i32
    return %c0_i32, %c0_i32_0 : i32, i32
  }
  func.func @transform_6(%arg0: i32) -> (i32, i32) {
    %c0_i32 = arith.constant 0 : i32
    %c0_i32_0 = arith.constant 0 : i32
    %c0_i32_1 = arith.constant 0 : i32
    return %c0_i32, %c0_i32_0 : i32, i32
  }
  func.func @transform_7(%arg0: i32) -> (i32, i32) {
    %c0_i32 = arith.constant 0 : i32
    %c0_i32_0 = arith.constant 0 : i32
    %c0_i32_1 = arith.constant 0 : i32
    return %c0_i32, %c0_i32_0 : i32, i32
  }
  func.func @transform_8(%arg0: i32) -> (i32, i32) {
    %c0_i32 = arith.constant 0 : i32
    %c0_i32_0 = arith.constant 0 : i32
    %c0_i32_1 = arith.constant 0 : i32
    return %c0_i32, %c0_i32_0 : i32, i32
  }
  func.func @transform_9(%arg0: i32) -> (i32, i32) {
    %c0_i32 = arith.constant 0 : i32
    %c0_i32_0 = arith.constant 0 : i32
    %c0_i32_1 = arith.constant 0 : i32
    return %c0_i32, %c0_i32_0 : i32, i32
  }
  func.func @transform_10(%arg0: i32) -> (i32, i32) {
    %c0_i32 = arith.constant 0 : i32
    %c0_i32_0 = arith.constant 0 : i32
    %c0_i32_1 = arith.constant 0 : i32
    return %c0_i32, %c0_i32_0 : i32, i32
  }
  func.func @transform_11(%arg0: i32) -> (i32, i32) {
    %c0_i32 = arith.constant 0 : i32
    %c0_i32_0 = arith.constant 0 : i32
    %c0_i32_1 = arith.constant 0 : i32
    return %c0_i32, %c0_i32_0 : i32, i32
  }
  func.func @transform_12(%arg0: i32) -> i32 {
    %c0_i32 = arith.constant 0 : i32
    %c0_i32_0 = arith.constant 0 : i32
    return %c0_i32 : i32
  }
  func.func @transform_13(%arg0: i32) -> (i32, i32) {
    %c0_i32 = arith.constant 0 : i32
    %c0_i32_0 = arith.constant 0 : i32
    %c0_i32_1 = arith.constant 0 : i32
    return %c0_i32, %c0_i32_0 : i32, i32
  }
}

</mosaic_0001>

<llo_original>
// kernel: autoencoder_forward.1
$region0: #{autoencoder_forward.1}
  #allocation0 [shape = 'u32[]', space=smem, size = 0x4, offset = 0x4, fixed_abs, tag = 'smem constant byte address 0x4 - core index']
  #allocation1 [shape = 'u32[144,128]{1,0:T(1,128)}', space=vmem, size = 0x12000, scoped, tag = 'internal scratch']
  %s0 = inlined_call_operand.vmem [shape: f32[4,16,128], index: 0, kind: input, shape index: {}]
  %s1 = inlined_call_operand.vmem [shape: f32[9,128], index: 1, kind: input, shape index: {}]
  %s2 = inlined_call_operand.vmem [shape: f32[8,16], index: 2, kind: input, shape index: {}]
  %s3 = inlined_call_operand.vmem [shape: f32[8,1], index: 3, kind: input, shape index: {}]
  %s4 = inlined_call_operand.vmem [shape: f32[8,1], index: 4, kind: input, shape index: {}]
  %s5 = inlined_call_operand.vmem [shape: f32[8,1], index: 5, kind: input, shape index: {}]
  %s6 = inlined_call_operand.vmem [shape: f32[8,9], index: 6, kind: input, shape index: {}]
  %s7 = inlined_call_operand.vmem [shape: f32[8,9], index: 7, kind: input, shape index: {}]
  %s8 = inlined_call_operand.vmem [shape: f32[8,1], index: 8, kind: input, shape index: {}]
  %s9 = inlined_call_operand.vmem [shape: f32[8,1], index: 9, kind: input, shape index: {}]
  %s10 = inlined_call_operand.vmem [shape: f32[8,1], index: 10, kind: input, shape index: {}]
  %s11 = inlined_call_operand.vmem [shape: f32[8,9], index: 11, kind: input, shape index: {}]
  %s12 = inlined_call_operand.vmem [shape: f32[4], index: 12, kind: input, shape index: {}]
  %s13 = inlined_call_operand.vmem [shape: f32[4,128], index: 13, kind: output, shape index: {}]
  %s14 = sld [smem:[#allocation0]]
  $region66: #{autoencoder_forward.1} parent=0
    _
  %s16 = ssub.s32 1, %s14
  %s17 = scalar_select 0, %s16, %s14
  $region1: #{autoencoder_forward.1} parent=0
    #allocation2 [shape = 'u8[512]{0}', space=smem, size = 0x200, scoped, tag = 'input window, operand 12, single buffered']
    #allocation3 [shape = 's32[1]{0}', space=sflag, size = 0x4, scoped, tag = 'scoped memory for autoencoder_forward.1']
    %18 = vsyncpa [#allocation3], 0
    // Predicated region
    $region2: #{autoencoder_forward.1} parent=1 // pred_check
      _
    $region3: #{autoencoder_forward.1} parent=1 // pred_check_branch
      %20 = sbr.rel (0) target = $region5
    $region4: #{autoencoder_forward.1} parent=1 // pred_region
      _
    $region5: #{autoencoder_forward.1} parent=1 // pred_fallthru
      _
    // Predicated region
    $region6: #{autoencoder_forward.1} parent=1 // pred_check
      _
    $region7: #{autoencoder_forward.1} parent=1 // pred_check_branch
      %22 = sbr.rel (0) target = $region9
    $region8: #{autoencoder_forward.1} parent=1 // pred_region
      _
    $region9: #{autoencoder_forward.1} parent=1 // pred_fallthru
      _
    // Predicated region
    $region10: #{autoencoder_forward.1} parent=1 // pred_check
      _
    $region11: #{autoencoder_forward.1} parent=1 // pred_check_branch
      %24 = sbr.rel (0) target = $region13
    $region12: #{autoencoder_forward.1} parent=1 // pred_region
      _
    $region13: #{autoencoder_forward.1} parent=1 // pred_fallthru
      _
    // Predicated region
    $region14: #{autoencoder_forward.1} parent=1 // pred_check
      _
    $region15: #{autoencoder_forward.1} parent=1 // pred_check_branch
      %26 = sbr.rel (0) target = $region17
    $region16: #{autoencoder_forward.1} parent=1 // pred_region
      _
    $region17: #{autoencoder_forward.1} parent=1 // pred_fallthru
      _
    // Predicated region
    $region18: #{autoencoder_forward.1} parent=1 // pred_check
      _
    $region19: #{autoencoder_forward.1} parent=1 // pred_check_branch
      %28 = sbr.rel (0) target = $region21
    $region20: #{autoencoder_forward.1} parent=1 // pred_region
      _
    $region21: #{autoencoder_forward.1} parent=1 // pred_fallthru
      _
    // Predicated region
    $region22: #{autoencoder_forward.1} parent=1 // pred_check
      _
    $region23: #{autoencoder_forward.1} parent=1 // pred_check_branch
      %30 = sbr.rel (0) target = $region25
    $region24: #{autoencoder_forward.1} parent=1 // pred_region
      _
    $region25: #{autoencoder_forward.1} parent=1 // pred_fallthru
      _
    // Predicated region
    $region26: #{autoencoder_forward.1} parent=1 // pred_check
      _
    $region27: #{autoencoder_forward.1} parent=1 // pred_check_branch
      %32 = sbr.rel (0) target = $region29
    $region28: #{autoencoder_forward.1} parent=1 // pred_region
      _
    $region29: #{autoencoder_forward.1} parent=1 // pred_fallthru
      _
    // Predicated region
    $region30: #{autoencoder_forward.1} parent=1 // pred_check
      _
    $region31: #{autoencoder_forward.1} parent=1 // pred_check_branch
      %34 = sbr.rel (0) target = $region33
    $region32: #{autoencoder_forward.1} parent=1 // pred_region
      _
    $region33: #{autoencoder_forward.1} parent=1 // pred_fallthru
      _
    // Predicated region
    $region34: #{autoencoder_forward.1} parent=1 // pred_check
      _
    $region35: #{autoencoder_forward.1} parent=1 // pred_check_branch
      %36 = sbr.rel (0) target = $region37
    $region36: #{autoencoder_forward.1} parent=1 // pred_region
      _
    $region37: #{autoencoder_forward.1} parent=1 // pred_fallthru
      _
    // Predicated region
    $region38: #{autoencoder_forward.1} parent=1 // pred_check
      _
    $region39: #{autoencoder_forward.1} parent=1 // pred_check_branch
      %38 = sbr.rel (0) target = $region41
    $region40: #{autoencoder_forward.1} parent=1 // pred_region
      _
    $region41: #{autoencoder_forward.1} parent=1 // pred_fallthru
      _
    // Predicated region
    $region42: #{autoencoder_forward.1} parent=1 // pred_check
      _
    $region43: #{autoencoder_forward.1} parent=1 // pred_check_branch
      %40 = sbr.rel (0) target = $region45
    $region44: #{autoencoder_forward.1} parent=1 // pred_region
      _
    $region45: #{autoencoder_forward.1} parent=1 // pred_fallthru
      _
    // Predicated region
    $region46: #{autoencoder_forward.1} parent=1 // pred_check
      _
    $region47: #{autoencoder_forward.1} parent=1 // pred_check_branch
      %42 = sbr.rel (0) target = $region49
    $region48: #{autoencoder_forward.1} parent=1 // pred_region
      _
    $region49: #{autoencoder_forward.1} parent=1 // pred_fallthru
      _
    // Predicated region
    $region50: #{autoencoder_forward.1} parent=1 // pred_check
      _
    $region51: #{autoencoder_forward.1} parent=1 // pred_check_branch
      %44 = sbr.rel (0) target = $region53
    $region52: #{autoencoder_forward.1} parent=1 // pred_region
      %s46 = ssub.s32 16, 16
      %47 = vsyncadd [#allocation3], %s46
      %s49 = sshll.u32 %s12, 4
      %s50 = int_to_ptr.vmem [resolvable:$true] %s49
      %52 = dma.vmem_to_smem %s50, 16, [#allocation2], [#allocation3]
    $region53: #{autoencoder_forward.1} parent=1 // pred_fallthru
      _
    // Predicated region
    $region54: #{autoencoder_forward.1} parent=1 // pred_check
      _
    $region55: #{autoencoder_forward.1} parent=1 // pred_check_branch
      %54 = sbr.rel (0) target = $region57
    $region56: #{autoencoder_forward.1} parent=1 // pred_region
      %55 = dma.done [#allocation3], 16
    $region57: #{autoencoder_forward.1} parent=1 // pred_fallthru
      _
    %56 = sfence
    %v57 = vld [vmem:[%s1] sm:$0xff]
    %v58 = vld [vmem:[%s1 + $0x8] sm:$0x1]
    %v59 = vld [vmem:[%s2] sm:$0xff]
    %v60 = vld [vmem:[%s3] sm:$0xff]
    %v61 = vld [vmem:[%s0] sm:$0xff]
    %v62 = vld [vmem:[%s0 + $0x8] sm:$0xff]
    %64 = vset.pattern.permute.xlu0 0
    %65 = vperm.xlu0 %64, %v60
    %v66 = vpop.permute.xlu0 %65
    %vm68 = vcmask 130048
    %v70 = vsel %vm68, %v59, 0
    %72 = vmatprep.subr.mxu0 0.0
    %73 = vmatpush1.msra.mxu0 %v61
    %74 = vmatprep.subr.mxu0 0.0
    %75 = vmatpush1.msra.mxu0 %v62
    %76 = vmatprep.subr.mxu0 0.0
    %77 = vmatpush1.msra.mxu0 0.0
    %78 = vmatprep.subr.mxu0 0.0
    %79 = vmatpush1.msra.mxu0 0.0
    %80 = vmatprep.subr.mxu0 0.0
    %81 = vmatpush1.msra.mxu0 0.0
    %82 = vmatprep.subr.mxu0 0.0
    %83 = vmatpush1.msra.mxu0 0.0
    %84 = vmatprep.subr.mxu0 0.0
    %85 = vmatpush1.msra.mxu0 0.0
    %86 = vmatprep.subr.mxu0 0.0
    %87 = vmatpush1.msra.mxu0 0.0
    %88 = vmatprep.subr.mxu0 0.0
    %89 = vmatpush1.msra.mxu0 0.0
    %90 = vmatprep.subr.mxu0 0.0
    %91 = vmatpush1.msra.mxu0 0.0
    %92 = vmatprep.subr.mxu0 0.0
    %93 = vmatpush1.msra.mxu0 0.0
    %94 = vmatprep.subr.mxu0 0.0
    %95 = vmatpush1.msra.mxu0 0.0
    %96 = vmatprep.subr.mxu0 0.0
    %97 = vmatpush1.msra.mxu0 0.0
    %98 = vmatprep.subr.mxu0 0.0
    %99 = vmatpush1.msra.mxu0 0.0
    %100 = vmatprep.subr.mxu0 0.0
    %101 = vmatpush1.msra.mxu0 0.0
    %102 = vmatprep.subr.mxu0 0.0
    %103 = vmatpush1.msra.mxu0 0.0
    %104 = vmatprep.subr.mxu0 0.0
    %105 = vmatpush1.msra.mxu0 0.0
    %106 = vmatprep.subr.mxu0 0.0
    %107 = vmatpush1.msra.mxu0 0.0
    %108 = vmatprep.subr.mxu0 0.0
    %109 = vmatpush1.msra.mxu0 0.0
    %110 = vmatprep.subr.mxu0 0.0
    %111 = vmatpush1.msra.mxu0 0.0
    %112 = vmatprep.subr.mxu0 0.0
    %113 = vmatpush1.msra.mxu0 0.0
    %114 = vmatprep.subr.mxu0 0.0
    %115 = vmatpush1.msra.mxu0 0.0
    %116 = vmatprep.subr.mxu0 0.0
    %117 = vmatpush1.msra.mxu0 0.0
    %118 = vmatprep.subr.mxu0 0.0
    %119 = vmatpush1.msra.mxu0 0.0
    %120 = vmatprep.subr.mxu0 0.0
    %121 = vmatpush1.msra.mxu0 0.0
    %122 = vmatprep.subr.mxu0 0.0
    %123 = vmatpush1.msra.mxu0 0.0
    %124 = vmatprep.subr.mxu0 0.0
    %125 = vmatpush1.msra.mxu0 0.0
    %126 = vmatprep.subr.mxu0 0.0
    %127 = vmatpush1.msra.mxu0 0.0
    %128 = vmatprep.subr.mxu0 0.0
    %129 = vmatpush1.msra.mxu0 0.0
    %130 = vmatprep.subr.mxu0 0.0
    %131 = vmatpush1.msra.mxu0 0.0
    %132 = vmatprep.subr.mxu0 0.0
    %133 = vmatpush1.msra.mxu0 0.0
    %134 = vmatprep.subr.mxu0 0.0
    %135 = vmatpush1.msra.mxu0 0.0
    %136 = vmatprep.mubr.f32.mxu0 0.0
    %137 = vmatmul.mubr.f32.gmra.mrb[0].mxu0 %v70
    %v138 = vpop.f32.mrb[0].mxu0
    %v139 = vadd.f32 %v66, %v138
    %v140 = vpop.f32.mrb[0].mxu0
    %141 = vdwg.mxu0
    %v142 = vmax.f32 %v139, 0.0
    %s143 = scalar_lea.vmem %s0, 16
    %v144 = vld [vmem:[%s143] sm:$0xff]
    %v145 = vld [vmem:[%s143 + $0x8] sm:$0xff]
    %146 = vmatprep.subr.mxu0 0.0
    %147 = vmatpush1.msra.mxu0 %v144
    %148 = vmatprep.subr.mxu0 0.0
    %149 = vmatpush1.msra.mxu0 %v145
    %150 = vmatprep.subr.mxu0 0.0
    %151 = vmatpush1.msra.mxu0 0.0
    %152 = vmatprep.subr.mxu0 0.0
    %153 = vmatpush1.msra.mxu0 0.0
    %154 = vmatprep.subr.mxu0 0.0
    %155 = vmatpush1.msra.mxu0 0.0
    %156 = vmatprep.subr.mxu0 0.0
    %157 = vmatpush1.msra.mxu0 0.0
    %158 = vmatprep.subr.mxu0 0.0
    %159 = vmatpush1.msra.mxu0 0.0
    %160 = vmatprep.subr.mxu0 0.0
    %161 = vmatpush1.msra.mxu0 0.0
    %162 = vmatprep.subr.mxu0 0.0
    %163 = vmatpush1.msra.mxu0 0.0
    %164 = vmatprep.subr.mxu0 0.0
    %165 = vmatpush1.msra.mxu0 0.0
    %166 = vmatprep.subr.mxu0 0.0
    %167 = vmatpush1.msra.mxu0 0.0
    %168 = vmatprep.subr.mxu0 0.0
    %169 = vmatpush1.msra.mxu0 0.0
    %170 = vmatprep.subr.mxu0 0.0
    %171 = vmatpush1.msra.mxu0 0.0
    %172 = vmatprep.subr.mxu0 0.0
    %173 = vmatpush1.msra.mxu0 0.0
    %174 = vmatprep.subr.mxu0 0.0
    %175 = vmatpush1.msra.mxu0 0.0
    %176 = vmatprep.subr.mxu0 0.0
    %177 = vmatpush1.msra.mxu0 0.0
    %178 = vmatprep.subr.mxu0 0.0
    %179 = vmatpush1.msra.mxu0 0.0
    %180 = vmatprep.subr.mxu0 0.0
    %181 = vmatpush1.msra.mxu0 0.0
    %182 = vmatprep.subr.mxu0 0.0
    %183 = vmatpush1.msra.mxu0 0.0
    %184 = vmatprep.subr.mxu0 0.0
    %185 = vmatpush1.msra.mxu0 0.0
    %186 = vmatprep.subr.mxu0 0.0
    %187 = vmatpush1.msra.mxu0 0.0
    %188 = vmatprep.subr.mxu0 0.0
    %189 = vmatpush1.msra.mxu0 0.0
    %190 = vmatprep.subr.mxu0 0.0
    %191 = vmatpush1.msra.mxu0 0.0
    %192 = vmatprep.subr.mxu0 0.0
    %193 = vmatpush1.msra.mxu0 0.0
    %194 = vmatprep.subr.mxu0 0.0
    %195 = vmatpush1.msra.mxu0 0.0
    %196 = vmatprep.subr.mxu0 0.0
    %197 = vmatpush1.msra.mxu0 0.0
    %198 = vmatprep.subr.mxu0 0.0
    %199 = vmatpush1.msra.mxu0 0.0
    %200 = vmatprep.subr.mxu0 0.0
    %201 = vmatpush1.msra.mxu0 0.0
    %202 = vmatprep.subr.mxu0 0.0
    %203 = vmatpush1.msra.mxu0 0.0
    %204 = vmatprep.subr.mxu0 0.0
    %205 = vmatpush1.msra.mxu0 0.0
    %206 = vmatprep.subr.mxu0 0.0
    %207 = vmatpush1.msra.mxu0 0.0
    %208 = vmatprep.subr.mxu0 0.0
    %209 = vmatpush1.msra.mxu0 0.0
    %210 = vmatprep.mubr.f32.mxu0 0.0
    %211 = vmatmul.mubr.f32.gmra.mrb[0].mxu0 %v70
    %v212 = vpop.f32.mrb[0].mxu0
    %v213 = vadd.f32 %v66, %v212
    %v214 = vpop.f32.mrb[0].mxu0
    %215 = vdwg.mxu0
    %v216 = vmax.f32 %v213, 0.0
    %v217 = vmax.f32 %v142, %v216
    %s218 = scalar_lea.vmem %s0, 32
    %v219 = vld [vmem:[%s218] sm:$0xff]
    %v220 = vld [vmem:[%s218 + $0x8] sm:$0xff]
    %221 = vmatprep.subr.mxu0 0.0
    %222 = vmatpush1.msra.mxu0 %v219
    %223 = vmatprep.subr.mxu0 0.0
    %224 = vmatpush1.msra.mxu0 %v220
    %225 = vmatprep.subr.mxu0 0.0
    %226 = vmatpush1.msra.mxu0 0.0
    %227 = vmatprep.subr.mxu0 0.0
    %228 = vmatpush1.msra.mxu0 0.0
    %229 = vmatprep.subr.mxu0 0.0
    %230 = vmatpush1.msra.mxu0 0.0
    %231 = vmatprep.subr.mxu0 0.0
    %232 = vmatpush1.msra.mxu0 0.0
    %233 = vmatprep.subr.mxu0 0.0
    %234 = vmatpush1.msra.mxu0 0.0
    %235 = vmatprep.subr.mxu0 0.0
    %236 = vmatpush1.msra.mxu0 0.0
    %237 = vmatprep.subr.mxu0 0.0
    %238 = vmatpush1.msra.mxu0 0.0
    %239 = vmatprep.subr.mxu0 0.0
    %240 = vmatpush1.msra.mxu0 0.0
    %241 = vmatprep.subr.mxu0 0.0
    %242 = vmatpush1.msra.mxu0 0.0
    %243 = vmatprep.subr.mxu0 0.0
    %244 = vmatpush1.msra.mxu0 0.0
    %245 = vmatprep.subr.mxu0 0.0
    %246 = vmatpush1.msra.mxu0 0.0
    %247 = vmatprep.subr.mxu0 0.0
    %248 = vmatpush1.msra.mxu0 0.0
    %249 = vmatprep.subr.mxu0 0.0
    %250 = vmatpush1.msra.mxu0 0.0
    %251 = vmatprep.subr.mxu0 0.0
    %252 = vmatpush1.msra.mxu0 0.0
    %253 = vmatprep.subr.mxu0 0.0
    %254 = vmatpush1.msra.mxu0 0.0
    %255 = vmatprep.subr.mxu0 0.0
    %256 = vmatpush1.msra.mxu0 0.0
    %257 = vmatprep.subr.mxu0 0.0
    %258 = vmatpush1.msra.mxu0 0.0
    %259 = vmatprep.subr.mxu0 0.0
    %260 = vmatpush1.msra.mxu0 0.0
    %261 = vmatprep.subr.mxu0 0.0
    %262 = vmatpush1.msra.mxu0 0.0
    %263 = vmatprep.subr.mxu0 0.0
    %264 = vmatpush1.msra.mxu0 0.0
    %265 = vmatprep.subr.mxu0 0.0
    %266 = vmatpush1.msra.mxu0 0.0
    %267 = vmatprep.subr.mxu0 0.0
    %268 = vmatpush1.msra.mxu0 0.0
    %269 = vmatprep.subr.mxu0 0.0
    %270 = vmatpush1.msra.mxu0 0.0
    %271 = vmatprep.subr.mxu0 0.0
    %272 = vmatpush1.msra.mxu0 0.0
    %273 = vmatprep.subr.mxu0 0.0
    %274 = vmatpush1.msra.mxu0 0.0
    %275 = vmatprep.subr.mxu0 0.0
    %276 = vmatpush1.msra.mxu0 0.0
    %277 = vmatprep.subr.mxu0 0.0
    %278 = vmatpush1.msra.mxu0 0.0
    %279 = vmatprep.subr.mxu0 0.0
    %280 = vmatpush1.msra.mxu0 0.0
    %281 = vmatprep.subr.mxu0 0.0
    %282 = vmatpush1.msra.mxu0 0.0
    %283 = vmatprep.subr.mxu0 0.0
    %284 = vmatpush1.msra.mxu0 0.0
    %285 = vmatprep.mubr.f32.mxu0 0.0
    %286 = vmatmul.mubr.f32.gmra.mrb[0].mxu0 %v70
    %v287 = vpop.f32.mrb[0].mxu0
    %v288 = vadd.f32 %v66, %v287
    %v289 = vpop.f32.mrb[0].mxu0
    %290 = vdwg.mxu0
    %v291 = vmax.f32 %v288, 0.0
    %v292 = vmax.f32 %v217, %v291
    %s293 = scalar_lea.vmem %s0, 48
    %v294 = vld [vmem:[%s293] sm:$0xff]
    %v295 = vld [vmem:[%s293 + $0x8] sm:$0xff]
    %296 = vmatprep.subr.mxu0 0.0
    %297 = vmatpush1.msra.mxu0 %v294
    %298 = vmatprep.subr.mxu0 0.0
    %299 = vmatpush1.msra.mxu0 %v295
    %300 = vmatprep.subr.mxu0 0.0
    %301 = vmatpush1.msra.mxu0 0.0
    %302 = vmatprep.subr.mxu0 0.0
    %303 = vmatpush1.msra.mxu0 0.0
    %304 = vmatprep.subr.mxu0 0.0
    %305 = vmatpush1.msra.mxu0 0.0
    %306 = vmatprep.subr.mxu0 0.0
    %307 = vmatpush1.msra.mxu0 0.0
    %308 = vmatprep.subr.mxu0 0.0
    %309 = vmatpush1.msra.mxu0 0.0
    %310 = vmatprep.subr.mxu0 0.0
    %311 = vmatpush1.msra.mxu0 0.0
    %312 = vmatprep.subr.mxu0 0.0
    %313 = vmatpush1.msra.mxu0 0.0
    %314 = vmatprep.subr.mxu0 0.0
    %315 = vmatpush1.msra.mxu0 0.0
    %316 = vmatprep.subr.mxu0 0.0
    %317 = vmatpush1.msra.mxu0 0.0
    %318 = vmatprep.subr.mxu0 0.0
    %319 = vmatpush1.msra.mxu0 0.0
    %320 = vmatprep.subr.mxu0 0.0
    %321 = vmatpush1.msra.mxu0 0.0
    %322 = vmatprep.subr.mxu0 0.0
    %323 = vmatpush1.msra.mxu0 0.0
    %324 = vmatprep.subr.mxu0 0.0
    %325 = vmatpush1.msra.mxu0 0.0
    %326 = vmatprep.subr.mxu0 0.0
    %327 = vmatpush1.msra.mxu0 0.0
    %328 = vmatprep.subr.mxu0 0.0
    %329 = vmatpush1.msra.mxu0 0.0
    %330 = vmatprep.subr.mxu0 0.0
    %331 = vmatpush1.msra.mxu0 0.0
    %332 = vmatprep.subr.mxu0 0.0
    %333 = vmatpush1.msra.mxu0 0.0
    %334 = vmatprep.subr.mxu0 0.0
    %335 = vmatpush1.msra.mxu0 0.0
    %336 = vmatprep.subr.mxu0 0.0
    %337 = vmatpush1.msra.mxu0 0.0
    %338 = vmatprep.subr.mxu0 0.0
    %339 = vmatpush1.msra.mxu0 0.0
    %340 = vmatprep.subr.mxu0 0.0
    %341 = vmatpush1.msra.mxu0 0.0
    %342 = vmatprep.subr.mxu0 0.0
    %343 = vmatpush1.msra.mxu0 0.0
    %344 = vmatprep.subr.mxu0 0.0
    %345 = vmatpush1.msra.mxu0 0.0
    %346 = vmatprep.subr.mxu0 0.0
    %347 = vmatpush1.msra.mxu0 0.0
    %348 = vmatprep.subr.mxu0 0.0
    %349 = vmatpush1.msra.mxu0 0.0
    %350 = vmatprep.subr.mxu0 0.0
    %351 = vmatpush1.msra.mxu0 0.0
    %352 = vmatprep.subr.mxu0 0.0
    %353 = vmatpush1.msra.mxu0 0.0
    %354 = vmatprep.subr.mxu0 0.0
    %355 = vmatpush1.msra.mxu0 0.0
    %356 = vmatprep.subr.mxu0 0.0
    %357 = vmatpush1.msra.mxu0 0.0
    %358 = vmatprep.subr.mxu0 0.0
    %359 = vmatpush1.msra.mxu0 0.0
    %360 = vmatprep.mubr.f32.mxu0 0.0
    %361 = vmatmul.mubr.f32.gmra.mrb[0].mxu0 %v70
    %v362 = vpop.f32.mrb[0].mxu0
    %v363 = vadd.f32 %v66, %v362
    %v364 = vpop.f32.mrb[0].mxu0
    %365 = vdwg.mxu0
    %v366 = vmax.f32 %v363, 0.0
    %v367 = vmax.f32 %v292, %v366
    %v368 = vld [vmem:[%s4] sm:$0xff]
    %v369 = vld [vmem:[%s5] sm:$0xff]
    %370 = vadd.xlane.f32.xlu0 %v367
    %v371 = vpop.xlane.xlu0 %370
    %v372 = vmul.f32 %v371, 0.0078125
    %v373 = vsub.f32 %v367, %v372
    %v374 = vmul.f32 %v373, %v373
    %375 = vadd.xlane.f32.xlu0 %v374
    %v376 = vpop.xlane.xlu0 %375
    %v377 = vmul.f32 %v376, 0.0078125
    %v378 = vadd.f32 %v377, 1e-05
    %v379 = vrsqrt.pop %v378
    %v380 = vmul.f32 %v373, %v379
    %382 = vset.pattern.permute.xlu0 0
    %383 = vperm.xlu0 %382, %v368
    %v384 = vpop.permute.xlu0 %383
    %v386 = vmul.f32 %v380, %v384
    %388 = vset.pattern.permute.xlu0 0
    %389 = vperm.xlu0 %388, %v369
    %v390 = vpop.permute.xlu0 %389
    %v392 = vadd.f32 %v386, %v390
    %v393 = vld [vmem:[%s6] sm:$0xff]
    %394 = vrot.lane.b32.xlu0 %v392, 9
    %v395 = vpop.permute.xlu0 %394
    %v396 = vlaneseq
    %v397 = vshrl.u32 %v396, 7
    %v398 = vsub.s32 0, %v397
    %v399 = vrot.slane %v57, %v398
    %v400 = vmul.f32 %v395, %v399
    %402 = vset.pattern.permute.xlu0 0
    %403 = vperm.xlu0 %402, %v393
    %v404 = vpop.permute.xlu0 %403
    %v406 = vmul.f32 %v404, %v400
    %407 = vrot.lane.b32.xlu0 %v392, 8
    %v408 = vpop.permute.xlu0 %407
    %v409 = vlaneseq
    %v410 = vshrl.u32 %v409, 7
    %v411 = vsub.s32 1, %v410
    %v412 = vrot.slane %v57, %v411
    %v413 = vmul.f32 %v408, %v412
    %414 = vset.pattern.permute.xlu0 1
    %415 = vperm.xlu0 %414, %v393
    %v416 = vpop.permute.xlu0 %415
    %v418 = vmul.f32 %v416, %v413
    %v419 = vadd.f32 %v406, %v418
    %420 = vrot.lane.b32.xlu0 %v392, 7
    %v421 = vpop.permute.xlu0 %420
    %v422 = vlaneseq
    %v423 = vshrl.u32 %v422, 7
    %v424 = vsub.s32 2, %v423
    %v425 = vrot.slane %v57, %v424
    %v426 = vmul.f32 %v421, %v425
    %427 = vset.pattern.permute.xlu0 2
    %428 = vperm.xlu0 %427, %v393
    %v429 = vpop.permute.xlu0 %428
    %v431 = vmul.f32 %v429, %v426
    %v432 = vadd.f32 %v419, %v431
    %433 = vrot.lane.b32.xlu0 %v392, 1
    %v434 = vpop.permute.xlu0 %433
    %v435 = vlaneseq
    %v436 = vshrl.u32 %v435, 7
    %v437 = vsub.s32 3, %v436
    %v438 = vrot.slane %v57, %v437
    %v439 = vmul.f32 %v434, %v438
    %440 = vset.pattern.permute.xlu0 3
    %441 = vperm.xlu0 %440, %v393
    %v442 = vpop.permute.xlu0 %441
    %v444 = vmul.f32 %v442, %v439
    %v445 = vadd.f32 %v432, %v444
    %v446 = vlaneseq
    %v447 = vshrl.u32 %v446, 7
    %v448 = vsub.s32 4, %v447
    %v449 = vrot.slane %v57, %v448
    %v450 = vmul.f32 %v392, %v449
    %451 = vset.pattern.permute.xlu0 4
    %452 = vperm.xlu0 %451, %v393
    %v453 = vpop.permute.xlu0 %452
    %v455 = vmul.f32 %v453, %v450
    %v456 = vadd.f32 %v445, %v455
    %457 = vrot.lane.b32.xlu0 %v392, 127
    %v458 = vpop.permute.xlu0 %457
    %v459 = vlaneseq
    %v460 = vshrl.u32 %v459, 7
    %v461 = vsub.s32 5, %v460
    %v462 = vrot.slane %v57, %v461
    %v463 = vmul.f32 %v458, %v462
    %464 = vset.pattern.permute.xlu0 5
    %465 = vperm.xlu0 %464, %v393
    %v466 = vpop.permute.xlu0 %465
    %v468 = vmul.f32 %v466, %v463
    %v469 = vadd.f32 %v456, %v468
    %470 = vrot.lane.b32.xlu0 %v392, 121
    %v471 = vpop.permute.xlu0 %470
    %v472 = vlaneseq
    %v473 = vshrl.u32 %v472, 7
    %v474 = vsub.s32 6, %v473
    %v475 = vrot.slane %v57, %v474
    %v476 = vmul.f32 %v471, %v475
    %477 = vset.pattern.permute.xlu0 6
    %478 = vperm.xlu0 %477, %v393
    %v479 = vpop.permute.xlu0 %478
    %v481 = vmul.f32 %v479, %v476
    %v482 = vadd.f32 %v469, %v481
    %483 = vrot.lane.b32.xlu0 %v392, 120
    %v484 = vpop.permute.xlu0 %483
    %v485 = vlaneseq
    %v486 = vshrl.u32 %v485, 7
    %v487 = vsub.s32 7, %v486
    %v488 = vrot.slane %v57, %v487
    %v489 = vmul.f32 %v484, %v488
    %490 = vset.pattern.permute.xlu0 7
    %491 = vperm.xlu0 %490, %v393
    %v492 = vpop.permute.xlu0 %491
    %v494 = vmul.f32 %v492, %v489
    %v495 = vadd.f32 %v482, %v494
    %496 = vrot.lane.b32.xlu0 %v392, 119
    %v497 = vpop.permute.xlu0 %496
    %v498 = vlaneseq
    %v499 = vshrl.u32 %v498, 7
    %v500 = vsub.s32 0, %v499
    %v501 = vrot.slane %v58, %v500
    %v502 = vmul.f32 %v497, %v501
    %503 = vset.pattern.permute.xlu0 8
    %504 = vperm.xlu0 %503, %v393
    %v505 = vpop.permute.xlu0 %504
    %v507 = vmul.f32 %v505, %v502
    %v508 = vadd.f32 %v495, %v507
    %v509 = vrot.slane %v508, 4
    %v510 = vadd.f32 %v508, %v509
    %v511 = vrot.slane %v510, 2
    %v512 = vadd.f32 %v510, %v511
    %v513 = vrot.slane %v512, 1
    %v514 = vadd.f32 %v512, %v513
    %s515 = sld [smem:[#allocation2]]
    %v516 = vstv %s515
    %v517 = vadd.f32 %v514, %v516
    %v518 = vmax.f32 %v517, 0.0
    %s519 = sld [smem:[#allocation2 + $0x1]]
    %s520 = sld [smem:[#allocation2 + $0x2]]
    %521 = vadd.xlane.f32.xlu0 %v518
    %v522 = vpop.xlane.xlu0 %521
    %v523 = vmul.f32 %v522, 0.0078125
    %v524 = vsub.f32 %v518, %v523
    %v525 = vmul.f32 %v524, %v524
    %526 = vadd.xlane.f32.xlu0 %v525
    %v527 = vpop.xlane.xlu0 %526
    %v528 = vmul.f32 %v527, 0.0078125
    %v529 = vadd.f32 %v528, 1e-05
    %v530 = vrsqrt.pop %v529
    %v531 = vmul.f32 %v524, %v530
    %v532 = vstv %s519
    %v533 = vmul.f32 %v531, %v532
    %v534 = vstv %s520
    %v535 = vadd.f32 %v533, %v534
    %v536 = vld [vmem:[%s7] sm:$0xff]
    %537 = vrot.lane.b32.xlu0 %v535, 9
    %v538 = vpop.permute.xlu0 %537
    %v539 = vmul.f32 %v538, %v399
    %541 = vset.pattern.permute.xlu0 0
    %542 = vperm.xlu0 %541, %v536
    %v543 = vpop.permute.xlu0 %542
    %v545 = vmul.f32 %v543, %v539
    %546 = vrot.lane.b32.xlu0 %v535, 8
    %v547 = vpop.permute.xlu0 %546
    %v548 = vmul.f32 %v547, %v412
    %549 = vset.pattern.permute.xlu0 1
    %550 = vperm.xlu0 %549, %v536
    %v551 = vpop.permute.xlu0 %550
    %v553 = vmul.f32 %v551, %v548
    %v554 = vadd.f32 %v545, %v553
    %555 = vrot.lane.b32.xlu0 %v535, 7
    %v556 = vpop.permute.xlu0 %555
    %v557 = vmul.f32 %v556, %v425
    %558 = vset.pattern.permute.xlu0 2
    %559 = vperm.xlu0 %558, %v536
    %v560 = vpop.permute.xlu0 %559
    %v562 = vmul.f32 %v560, %v557
    %v563 = vadd.f32 %v554, %v562
    %564 = vrot.lane.b32.xlu0 %v535, 1
    %v565 = vpop.permute.xlu0 %564
    %v566 = vmul.f32 %v565, %v438
    %567 = vset.pattern.permute.xlu0 3
    %568 = vperm.xlu0 %567, %v536
    %v569 = vpop.permute.xlu0 %568
    %v571 = vmul.f32 %v569, %v566
    %v572 = vadd.f32 %v563, %v571
    %v573 = vmul.f32 %v535, %v449
    %574 = vset.pattern.permute.xlu0 4
    %575 = vperm.xlu0 %574, %v536
    %v576 = vpop.permute.xlu0 %575
    %v578 = vmul.f32 %v576, %v573
    %v579 = vadd.f32 %v572, %v578
    %580 = vrot.lane.b32.xlu0 %v535, 127
    %v581 = vpop.permute.xlu0 %580
    %v582 = vmul.f32 %v581, %v462
    %583 = vset.pattern.permute.xlu0 5
    %584 = vperm.xlu0 %583, %v536
    %v585 = vpop.permute.xlu0 %584
    %v587 = vmul.f32 %v585, %v582
    %v588 = vadd.f32 %v579, %v587
    %589 = vrot.lane.b32.xlu0 %v535, 121
    %v590 = vpop.permute.xlu0 %589
    %v591 = vmul.f32 %v590, %v475
    %592 = vset.pattern.permute.xlu0 6
    %593 = vperm.xlu0 %592, %v536
    %v594 = vpop.permute.xlu0 %593
    %v596 = vmul.f32 %v594, %v591
    %v597 = vadd.f32 %v588, %v596
    %598 = vrot.lane.b32.xlu0 %v535, 120
    %v599 = vpop.permute.xlu0 %598
    %v600 = vmul.f32 %v599, %v488
    %601 = vset.pattern.permute.xlu0 7
    %602 = vperm.xlu0 %601, %v536
    %v603 = vpop.permute.xlu0 %602
    %v605 = vmul.f32 %v603, %v600
    %v606 = vadd.f32 %v597, %v605
    %607 = vrot.lane.b32.xlu0 %v535, 119
    %v608 = vpop.permute.xlu0 %607
    %v609 = vmul.f32 %v608, %v501
    %610 = vset.pattern.permute.xlu0 8
    %611 = vperm.xlu0 %610, %v536
    %v612 = vpop.permute.xlu0 %611
    %v614 = vmul.f32 %v612, %v609
    %v615 = vadd.f32 %v606, %v614
    %v616 = vld [vmem:[%s8] sm:$0xff]
    %618 = vset.pattern.permute.xlu0 0
    %619 = vperm.xlu0 %618, %v616
    %v620 = vpop.permute.xlu0 %619
    %v622 = vadd.f32 %v615, %v620
    %v623 = vmax.f32 %v622, 0.0
    %v624 = vld [vmem:[%s9] sm:$0xff]
    %v625 = vld [vmem:[%s10] sm:$0xff]
    %626 = vadd.xlane.f32.xlu0 %v623
    %v627 = vpop.xlane.xlu0 %626
    %v628 = vmul.f32 %v627, 0.0078125
    %v629 = vsub.f32 %v623, %v628
    %v630 = vmul.f32 %v629, %v629
    %631 = vadd.xlane.f32.xlu0 %v630
    %v632 = vpop.xlane.xlu0 %631
    %v633 = vmul.f32 %v632, 0.0078125
    %v634 = vadd.f32 %v633, 1e-05
    %v635 = vrsqrt.pop %v634
    %v636 = vmul.f32 %v629, %v635
    %638 = vset.pattern.permute.xlu0 0
    %639 = vperm.xlu0 %638, %v624
    %v640 = vpop.permute.xlu0 %639
    %v642 = vmul.f32 %v636, %v640
    %644 = vset.pattern.permute.xlu0 0
    %645 = vperm.xlu0 %644, %v625
    %v646 = vpop.permute.xlu0 %645
    %v648 = vadd.f32 %v642, %v646
    %v649 = vld [vmem:[%s11] sm:$0xff]
    %v650 = vmul.f32 %v648, %v449
    %651 = vrot.lane.b32.xlu0 %v648, 127
    %v652 = vpop.permute.xlu0 %651
    %v653 = vmul.f32 %v652, %v462
    %654 = vrot.lane.b32.xlu0 %v648, 120
    %v655 = vpop.permute.xlu0 %654
    %v656 = vmul.f32 %v655, %v488
    %657 = vrot.lane.b32.xlu0 %v648, 119
    %v658 = vpop.permute.xlu0 %657
    %v659 = vmul.f32 %v658, %v501
    %661 = vset.pattern.permute.xlu0 4
    %662 = vperm.xlu0 %661, %v649
    %v663 = vpop.permute.xlu0 %662
    %v665 = vmul.f32 %v663, %v650
    %v666 = vrot.slane %v665, 4
    %v667 = vadd.f32 %v665, %v666
    %v668 = vrot.slane %v667, 2
    %v669 = vadd.f32 %v667, %v668
    %v670 = vrot.slane %v669, 1
    %v671 = vadd.f32 %v669, %v670
    %s672 = sld [smem:[#allocation2 + $0x3]]
    %v673 = vstv %s672
    %v674 = vadd.f32 %v671, %v673
    %v675 = vsub.f32 0.0, %v674
    %v676 = vmul.f32 %v675, 1.442695
    %v677 = vpow.pop %v676
    %v678 = vadd.f32 %v677, 1.0
    %v679 = vrcp.pop %v678
    %680 = vset.pattern.permute.xlu0 5
    %681 = vperm.xlu0 %680, %v649
    %v682 = vpop.permute.xlu0 %681
    %v684 = vmul.f32 %v682, %v650
    %685 = vset.pattern.permute.xlu0 3
    %686 = vperm.xlu0 %685, %v649
    %v687 = vpop.permute.xlu0 %686
    %v689 = vmul.f32 %v687, %v653
    %v690 = vadd.f32 %v684, %v689
    %v691 = vrot.slane %v690, 4
    %v692 = vadd.f32 %v690, %v691
    %v693 = vrot.slane %v692, 2
    %v694 = vadd.f32 %v692, %v693
    %v695 = vrot.slane %v694, 1
    %v696 = vadd.f32 %v694, %v695
    %v697 = vadd.f32 %v696, %v673
    %v698 = vsub.f32 0.0, %v697
    %v699 = vmul.f32 %v698, 1.442695
    %v700 = vpow.pop %v699
    %v701 = vadd.f32 %v700, 1.0
    %v702 = vrcp.pop %v701
    %703 = vset.pattern.permute.xlu0 7
    %704 = vperm.xlu0 %703, %v649
    %v705 = vpop.permute.xlu0 %704
    %v707 = vmul.f32 %v705, %v650
    %708 = vset.pattern.permute.xlu0 1
    %709 = vperm.xlu0 %708, %v649
    %v710 = vpop.permute.xlu0 %709
    %v712 = vmul.f32 %v710, %v656
    %v713 = vadd.f32 %v707, %v712
    %v714 = vrot.slane %v713, 4
    %v715 = vadd.f32 %v713, %v714
    %v716 = vrot.slane %v715, 2
    %v717 = vadd.f32 %v715, %v716
    %v718 = vrot.slane %v717, 1
    %v719 = vadd.f32 %v717, %v718
    %v720 = vadd.f32 %v719, %v673
    %v721 = vsub.f32 0.0, %v720
    %v722 = vmul.f32 %v721, 1.442695
    %v723 = vpow.pop %v722
    %v724 = vadd.f32 %v723, 1.0
    %v725 = vrcp.pop %v724
    %726 = vset.pattern.permute.xlu0 8
    %727 = vperm.xlu0 %726, %v649
    %v728 = vpop.permute.xlu0 %727
    %v730 = vmul.f32 %v728, %v650
    %731 = vset.pattern.permute.xlu0 6
    %732 = vperm.xlu0 %731, %v649
    %v733 = vpop.permute.xlu0 %732
    %v735 = vmul.f32 %v733, %v653
    %v736 = vadd.f32 %v730, %v735
    %737 = vset.pattern.permute.xlu0 2
    %738 = vperm.xlu0 %737, %v649
    %v739 = vpop.permute.xlu0 %738
    %v741 = vmul.f32 %v739, %v656
    %v742 = vadd.f32 %v736, %v741
    %743 = vset.pattern.permute.xlu0 0
    %744 = vperm.xlu0 %743, %v649
    %v745 = vpop.permute.xlu0 %744
    %v747 = vmul.f32 %v745, %v659
    %v748 = vadd.f32 %v742, %v747
    %v749 = vrot.slane %v748, 4
    %v750 = vadd.f32 %v748, %v749
    %v751 = vrot.slane %v750, 2
    %v752 = vadd.f32 %v750, %v751
    %v753 = vrot.slane %v752, 1
    %v754 = vadd.f32 %v752, %v753
    %v755 = vadd.f32 %v754, %v673
    %v756 = vsub.f32 0.0, %v755
    %v757 = vmul.f32 %v756, 1.442695
    %v758 = vpow.pop %v757
    %v759 = vadd.f32 %v758, 1.0
    %v760 = vrcp.pop %v759
    %vm761 = vcmask 1040384
    %v762 = vsel %vm761, %v679, %v702
    %vm763 = vcmask 1041408
    %v764 = vsel %vm763, %v762, %v725
    %vm765 = vcmask 1042432
    %v766 = vsel %vm765, %v764, %v760
    %767 = vst [vmem:[%s13] sm:$0xf] %v766
    // Predicated region
    $region58: #{autoencoder_forward.1} parent=1 // pred_check
      _
    $region59: #{autoencoder_forward.1} parent=1 // pred_check_branch
      %769 = sbr.rel (0) target = $region61
    $region60: #{autoencoder_forward.1} parent=1 // pred_region
      _
    $region61: #{autoencoder_forward.1} parent=1 // pred_fallthru
      _
    // Predicated region
    $region62: #{autoencoder_forward.1} parent=1 // pred_check
      _
    $region63: #{autoencoder_forward.1} parent=1 // pred_check_branch
      %771 = sbr.rel (0) target = $region65
    $region64: #{autoencoder_forward.1} parent=1 // pred_region
      _
    $region65: #{autoencoder_forward.1} parent=1 // pred_fallthru
      _
    %772 = vsyncpa [#allocation3], 1

</llo_original>
